<compile_context>
chip_gen: v7x
topology: tpu7x:2x2x1
jax: 0.10.0
libtpu: 0.0.40
codegen_flags: <defaults>
</compile_context>

<pallas_src>
import functools
import math

import jax
import jax.numpy as jnp
import numpy as np
from jax.experimental import pallas as pl
from jax.experimental.pallas import tpu as pltpu

_MIB = 1024 * 1024


def _round_up(a: int, b: int) -> int:
    return ((a + b - 1) // b) * b


def _vmem_capacity_bytes() -> int:
    """Physical per-core VMEM (v5e/v6e: 128 MiB, v7x: 64 MiB per TC)."""
    try:
        cap = int(getattr(pltpu.get_tpu_info(), "vmem_capacity_bytes", 0))
        if cap > 0:
            return cap
    except Exception:
        pass
    return 64 * _MIB  # conservative fallback (v7x-sized)


# --------------------------------------------------------------------------- #
# Kernel
# --------------------------------------------------------------------------- #
def mln_kernel(x_ref, c_ref, s_ref, bc_ref, wr_ref, br_ref, wgb_ref, bgb_ref,
               o_ref, *, num_seg):
    """One (tm, P*F) tile of lane-dense packed tokens.

    Each packed row holds `num_seg` consecutive tokens of F features.
      s_ref  : (PF, P)  block matrix with 1/F entries -> per-token mean / E[.]
      bc_ref : (P, PF)  block-ones broadcast matrix (per-token -> per-lane)
      wr_ref : (P*C, PF)      block-diag W_reduce   (bf16 by default)
      wgb_ref: (PF, 2*PF)     block-diag [W_gamma | W_beta] fused (bf16)
      br/bgb : f32 biases (tiled over packed tokens)
    """
    eps = jnp.float32(1e-5)
    x = x_ref[...].astype(jnp.float32)          # LN stats stay exact in f32

    # --- LayerNorm over each token's feature segment (no affine) -----------
    if num_seg == 1:
        mean = jnp.mean(x, axis=-1, keepdims=True)
        xc = x - mean
        var = jnp.mean(xc * xc, axis=-1, keepdims=True)
        x_ln = xc * jax.lax.rsqrt(var + eps)
    else:
        s = s_ref[...]                           # (PF, P), 1/F folded in
        bc = bc_ref[...]                         # (P, PF)
        mean = jnp.dot(x, s, preferred_element_type=jnp.float32)       # (tm, P)
        mean_b = jnp.dot(mean, bc, preferred_element_type=jnp.float32) # (tm, PF)
        xc = x - mean_b
        var = jnp.dot(xc * xc, s, preferred_element_type=jnp.float32)  # (tm, P)
        inv = jax.lax.rsqrt(var + eps)                                  # (tm, P)
        inv_b = jnp.dot(inv, bc, preferred_element_type=jnp.float32)    # (tm, PF)
        x_ln = xc * inv_b

    # --- reduce = ReLU(Linear(c_dim -> f_dim)), block-diag over packing ----
    # bf16 operands (weights pre-packed bf16), f32 accumulation on the MXU.
    mm_dtype = wr_ref.dtype
    c = c_ref[...].astype(mm_dtype)
    h = jnp.dot(c, wr_ref[...], preferred_element_type=jnp.float32) + br_ref[...]
    h = jnp.maximum(h, 0.0)

    # --- fused gamma/beta projection: one (PF, 2*PF) matmul ----------------
    # Note (v6e/v7x): K=PF only half-fills a 256-deep MXU; re-derive the
    # binding slot from a bundle dump before spending more effort here.
    gb = (jnp.dot(h.astype(mm_dtype), wgb_ref[...],
                  preferred_element_type=jnp.float32) + bgb_ref[...])
    pf = x.shape[-1]
    gamma = gb[:, :pf]
    beta = gb[:, pf:]

    o_ref[...] = (gamma * x_ln + beta).astype(o_ref.dtype)


# --------------------------------------------------------------------------- #
# Parameter packing (hoist out of the hot path; call once per weight set)
# --------------------------------------------------------------------------- #
def pack_mln_params(w_reduce, b_reduce, w_gamma, b_gamma, w_beta, b_beta, *,
                    matmul_dtype=jnp.bfloat16):
    """Pre-pack block-diagonal weights and LN-stat matrices for the kernel.

    Weights are in (in, out) layout: w_reduce (C, F), w_gamma/w_beta (F, F).
    """
    C, F = w_reduce.shape
    P = 128 // math.gcd(F, 128)          # pack P tokens -> PF is a multiple of 128
    eye_p = jnp.asarray(np.eye(P, dtype=np.float32))

    wr = jnp.kron(eye_p, w_reduce.astype(jnp.float32)).astype(matmul_dtype)   # (P*C, PF)
    br = jnp.tile(b_reduce.astype(jnp.float32).reshape(1, F), (1, P))          # (1, PF)
    wgb = jnp.concatenate(
        [jnp.kron(eye_p, w_gamma.astype(jnp.float32)),
         jnp.kron(eye_p, w_beta.astype(jnp.float32))],
        axis=1).astype(matmul_dtype)                                           # (PF, 2*PF)
    bgb = jnp.concatenate(
        [jnp.tile(b_gamma.astype(jnp.float32).reshape(1, F), (1, P)),
         jnp.tile(b_beta.astype(jnp.float32).reshape(1, F), (1, P))], axis=1)  # (1, 2*PF)

    # LN segment-mean (1/F folded in) and broadcast matrices (kept in f32).
    s_np = np.kron(np.eye(P, dtype=np.float32),
                   np.full((F, 1), 1.0 / F, np.float32))                       # (PF, P)
    bc_np = np.kron(np.eye(P, dtype=np.float32),
                    np.ones((1, F), np.float32))                               # (P, PF)

    return dict(P=P, f_dim=F, c_dim=C,
                wr=wr, br=br, wgb=wgb, bgb=bgb,
                s=jnp.asarray(s_np), bc=jnp.asarray(bc_np))


# --------------------------------------------------------------------------- #
# Tiling / pallas_call wrapper
# --------------------------------------------------------------------------- #
def _choose_tiling(rows: int, tm_max, vmem_cap: int):
    if vmem_cap >= 100 * _MIB:                    # v5e / v6e: 128 MiB VMEM
        vmem_limit = 96 * _MIB
        tm_cap = 8192
    else:                                         # v7x: 64 MiB per TensorCore
        vmem_limit = max(32 * _MIB, min(48 * _MIB, vmem_cap - 16 * _MIB))
        tm_cap = 4096
    if tm_max is not None:
        tm_cap = min(tm_cap, int(tm_max))
    tm_cap = max(8, tm_cap)

    # Large inputs: force >=4 steps (>=2 per v7x core) so both cores pipeline;
    # medium: >=2 steps for DMA/compute overlap.  Small: one full-array block.
    if rows >= 4 * 1024:
        steps_min = 4
    elif rows >= 2 * 1024:
        steps_min = 2
    else:
        steps_min = 1
    steps = max(steps_min, pl.cdiv(rows, tm_cap))
    if steps <= 1:
        tm_eff, steps = rows, 1                   # block == full dim (no padding)
    else:
        tm_eff = _round_up(pl.cdiv(rows, steps), 8)
        steps = pl.cdiv(rows, tm_eff)             # ragged last block is allowed
    return tm_eff, steps, vmem_limit


def _mln_call(x_packed, c_packed, params, tm_eff, steps, vmem_limit,
              out_dtype, single_buffer_consts):
    rows, PF = x_packed.shape
    PC = c_packed.shape[-1]
    P = params["P"]

    def const_spec(shape):
        if single_buffer_consts:
            return pl.BlockSpec(shape, lambda i: (0, 0),
                                pipeline_mode=pl.Buffered(1))
        return pl.BlockSpec(shape, lambda i: (0, 0))

    kernel = functools.partial(mln_kernel, num_seg=P)
    return pl.pallas_call(
        kernel,
        out_shape=jax.ShapeDtypeStruct((rows, PF), out_dtype),
        grid_spec=pltpu.PrefetchScalarGridSpec(
            num_scalar_prefetch=0,
            grid=(steps,),
            in_specs=[
                pl.BlockSpec((tm_eff, PF), lambda i: (i, 0)),   # x (packed rows)
                pl.BlockSpec((tm_eff, PC), lambda i: (i, 0)),   # c (packed rows)
                const_spec(params["s"].shape),                  # LN segment-mean
                const_spec(params["bc"].shape),                 # LN broadcast
                const_spec(params["wr"].shape),                 # W_reduce (blk-diag)
                const_spec(params["br"].shape),                 # b_reduce
                const_spec(params["wgb"].shape),                # [W_gamma|W_beta]
                const_spec(params["bgb"].shape),                # [b_gamma|b_beta]
            ],
            out_specs=pl.BlockSpec((tm_eff, PF), lambda i: (i, 0)),
        ),
        compiler_params=pltpu.CompilerParams(
            dimension_semantics=("parallel",),
            vmem_limit_bytes=vmem_limit,
        ),
    )(x_packed, c_packed, params["s"], params["bc"], params["wr"],
      params["br"], params["wgb"], params["bgb"])


def mln_pallas(x, c, params, *, tm_max=None):
    """x: (B, N, F), c: (B, N, C); params from pack_mln_params (packed once).

    Memory path is dtype-generic: pass bf16 x/c to halve HBM traffic (output
    follows x.dtype); all math inside the kernel accumulates in f32.
    """
    B, N, F = x.shape
    C = c.shape[-1]
    assert params["f_dim"] == F and params["c_dim"] == C
    P = params["P"]
    PF, PC = P * F, P * C

    M = B * N
    m_tokens = _round_up(M, P)                    # pad only to a multiple of P
    x2 = x.reshape(M, F)
    c2 = c.reshape(M, C)
    if m_tokens != M:
        # TODO(synk): handle the <P-token tail in-kernel to avoid this copy.
        x2 = jnp.pad(x2, ((0, m_tokens - M), (0, 0)))
        c2 = jnp.pad(c2, ((0, m_tokens - M), (0, 0)))
    rows = m_tokens // P
    x_packed = x2.reshape(rows, PF)               # free reshape (row-major)
    c_packed = c2.reshape(rows, PC)

    tm_eff, steps, vmem_limit = _choose_tiling(rows, tm_max, _vmem_capacity_bytes())

    try:
        out_packed = _mln_call(x_packed, c_packed, params, tm_eff, steps,
                               vmem_limit, x.dtype, single_buffer_consts=True)
    except Exception:
        # pl.Buffered(1) unavailable in this jax build -> default buffering.
        out_packed = _mln_call(x_packed, c_packed, params, tm_eff, steps,
                               vmem_limit, x.dtype, single_buffer_consts=False)

    out2 = out_packed.reshape(m_tokens, F)
    if m_tokens != M:
        out2 = out2[:M]
    return out2.reshape(B, N, F)


# --------------------------------------------------------------------------- #
# Reference + demo
# --------------------------------------------------------------------------- #
def mln_reference(x, c, w_reduce, b_reduce, w_gamma, b_gamma, w_beta, b_beta):
    mean = jnp.mean(x, axis=-1, keepdims=True)
    var = jnp.mean((x - mean) ** 2, axis=-1, keepdims=True)
    x_ln = (x - mean) * jax.lax.rsqrt(var + 1e-5)
    h = jnp.maximum(c @ w_reduce + b_reduce.reshape(-1), 0.0)
    gamma = h @ w_gamma + b_gamma.reshape(-1)
    beta = h @ w_beta + b_beta.reshape(-1)
    return gamma * x_ln + beta


if __name__ == "__main__":
    # Small shapes consistent with the module: c_dim = 8 (fx,fy,x1,y1,z1,x2,y2,z2).
    B, N, F, C_DIM = 2, 8, 32, 8

    key = jax.random.PRNGKey(0)
    kx, kc, kw, kb, kg, kbt, kbb, kx2, kc2 = jax.random.split(key, 9)

    x = jax.random.normal(kx, (B, N, F), dtype=jnp.float32)
    c = jax.random.normal(kc, (B, N, C_DIM), dtype=jnp.float32)

    bound = 1.0 / float(np.sqrt(C_DIM))
    w_reduce = jax.random.uniform(kw, (C_DIM, F), jnp.float32, -bound, bound)
    b_reduce = jax.random.uniform(kb, (1, F), jnp.float32, -bound, bound)
    # reset_parameters() zeroes gamma/beta weights; perturb them slightly so
    # the fused block-diagonal gamma/beta matmul path is actually exercised.
    w_gamma = 0.05 * jax.random.normal(kg, (F, F), jnp.float32)
    b_gamma = jnp.ones((1, F), jnp.float32)
    w_beta = 0.05 * jax.random.normal(kbt, (F, F), jnp.float32)
    b_beta = 0.05 * jax.random.normal(kbb, (1, F), jnp.float32)

    ref = mln_reference(x, c, w_reduce, b_reduce, w_gamma, b_gamma, w_beta, b_beta)

    # 1) Exact path (f32 MXU operands): tight tolerance.
    params_f32 = pack_mln_params(w_reduce, b_reduce, w_gamma, b_gamma,
                                 w_beta, b_beta, matmul_dtype=jnp.float32)
    out = jax.block_until_ready(mln_pallas(x, c, params_f32))
    assert out.shape == (B, N, F)
    assert jnp.allclose(out, ref, atol=1e-4, rtol=1e-4), "f32 path mismatch"

    # 2) Performance default: bf16 MXU operands (weights / c / h), f32 LN+acc.
    params = pack_mln_params(w_reduce, b_reduce, w_gamma, b_gamma, w_beta, b_beta)
    out_bf = jax.block_until_ready(mln_pallas(x, c, params))
    assert jnp.allclose(out_bf, ref, atol=2e-2, rtol=2e-2), "bf16-matmul path mismatch"

    # 3) bf16 memory path + multi-step grid + ragged-M (pad-to-P + slice) path.
    N2 = 1023
    xb = jax.random.normal(kx2, (B, N2, F), jnp.float32)
    cb = jax.random.normal(kc2, (B, N2, C_DIM), jnp.float32)
    xb16, cb16 = xb.astype(jnp.bfloat16), cb.astype(jnp.bfloat16)
    ref2 = mln_reference(xb16.astype(jnp.float32), cb16.astype(jnp.float32),
                         w_reduce, b_reduce, w_gamma, b_gamma, w_beta, b_beta)
    out2 = jax.block_until_ready(mln_pallas(xb16, cb16, params, tm_max=128))
    assert out2.shape == (B, N2, F)
    assert jnp.allclose(out2.astype(jnp.float32), ref2, atol=2e-2, rtol=2e-2), \
        "bf16 memory path mismatch"

    print("KERNEL_OK")
</pallas_src>

<mosaic_0001>
module attributes {stable_mosaic.version = 11 : i64} {
  func.func @mln_kernel(%arg0: i32, %arg1: memref<4x128xf32, #tpu.memory_space<vmem>>, %arg2: memref<4x32xf32, #tpu.memory_space<vmem>>, %arg3: memref<128x4xf32, #tpu.memory_space<vmem>>, %arg4: memref<4x128xf32, #tpu.memory_space<vmem>>, %arg5: memref<32x128xf32, #tpu.memory_space<vmem>>, %arg6: memref<1x128xf32, #tpu.memory_space<vmem>>, %arg7: memref<128x256xf32, #tpu.memory_space<vmem>>, %arg8: memref<1x256xf32, #tpu.memory_space<vmem>>, %arg9: memref<4x128xf32, #tpu.memory_space<vmem>>) attributes {dimension_semantics = [#tpu.dimension_semantics<parallel>], iteration_bounds = array<i64: 1>, scalar_prefetch = 0 : i64, scratch_operands = 0 : i64, tpu.core_type = #tpu.core_type<tc>, window_params = [{transform_indices = @transform_0, window_bounds = array<i64: 4, 128>}, {transform_indices = @transform_1, window_bounds = array<i64: 4, 32>}, {pipeline_mode = #tpu.pipeline_mode<synchronous>, transform_indices = @transform_2, window_bounds = array<i64: 128, 4>}, {pipeline_mode = #tpu.pipeline_mode<synchronous>, transform_indices = @transform_3, window_bounds = array<i64: 4, 128>}, {pipeline_mode = #tpu.pipeline_mode<synchronous>, transform_indices = @transform_4, window_bounds = array<i64: 32, 128>}, {pipeline_mode = #tpu.pipeline_mode<synchronous>, transform_indices = @transform_5, window_bounds = array<i64: 1, 128>}, {pipeline_mode = #tpu.pipeline_mode<synchronous>, transform_indices = @transform_6, window_bounds = array<i64: 128, 256>}, {pipeline_mode = #tpu.pipeline_mode<synchronous>, transform_indices = @transform_7, window_bounds = array<i64: 1, 256>}, {transform_indices = @transform_8, window_bounds = array<i64: 4, 128>}]} {
    %c0 = arith.constant 0 : index
    %c0_0 = arith.constant 0 : index
    %0 = vector.load %arg1[%c0, %c0_0] : memref<4x128xf32, #tpu.memory_space<vmem>>, vector<4x128xf32>
    %c0_1 = arith.constant 0 : index
    %c0_2 = arith.constant 0 : index
    %1 = vector.load %arg3[%c0_1, %c0_2] : memref<128x4xf32, #tpu.memory_space<vmem>>, vector<128x4xf32>
    %c0_3 = arith.constant 0 : index
    %c0_4 = arith.constant 0 : index
    %2 = vector.load %arg4[%c0_3, %c0_4] : memref<4x128xf32, #tpu.memory_space<vmem>>, vector<4x128xf32>
    %cst = arith.constant dense<0.000000e+00> : vector<4x4xf32>
    %3 = tpu.matmul %0, %1, %cst {dimension_numbers = #tpu.dot_dimension_numbers<[1], [0], [0], [1], [0, 0, 1, 1], [], []>} : vector<4x128xf32>, vector<128x4xf32>, vector<4x4xf32> -> vector<4x4xf32>
    %cst_5 = arith.constant dense<0.000000e+00> : vector<4x128xf32>
    %4 = tpu.matmul %3, %2, %cst_5 {dimension_numbers = #tpu.dot_dimension_numbers<[1], [0], [0], [1], [0, 0, 1, 1], [], []>} : vector<4x4xf32>, vector<4x128xf32>, vector<4x128xf32> -> vector<4x128xf32>
    %5 = arith.subf %0, %4 : vector<4x128xf32>
    %6 = arith.mulf %5, %5 : vector<4x128xf32>
    %cst_6 = arith.constant dense<0.000000e+00> : vector<4x4xf32>
    %7 = tpu.matmul %6, %1, %cst_6 {dimension_numbers = #tpu.dot_dimension_numbers<[1], [0], [0], [1], [0, 0, 1, 1], [], []>} : vector<4x128xf32>, vector<128x4xf32>, vector<4x4xf32> -> vector<4x4xf32>
    %cst_7 = arith.constant 9.99999974E-6 : f32
    %8 = vector.broadcast %cst_7 : f32 to vector<4x4xf32>
    %9 = arith.addf %7, %8 : vector<4x4xf32>
    %10 = math.rsqrt %9 : vector<4x4xf32>
    %cst_8 = arith.constant dense<0.000000e+00> : vector<4x128xf32>
    %11 = tpu.matmul %10, %2, %cst_8 {dimension_numbers = #tpu.dot_dimension_numbers<[1], [0], [0], [1], [0, 0, 1, 1], [], []>} : vector<4x4xf32>, vector<4x128xf32>, vector<4x128xf32> -> vector<4x128xf32>
    %12 = arith.mulf %5, %11 : vector<4x128xf32>
    %c0_9 = arith.constant 0 : index
    %c0_10 = arith.constant 0 : index
    %13 = vector.load %arg2[%c0_9, %c0_10] : memref<4x32xf32, #tpu.memory_space<vmem>>, vector<4x32xf32>
    %c0_11 = arith.constant 0 : index
    %c0_12 = arith.constant 0 : index
    %14 = vector.load %arg5[%c0_11, %c0_12] : memref<32x128xf32, #tpu.memory_space<vmem>>, vector<32x128xf32>
    %cst_13 = arith.constant dense<0.000000e+00> : vector<4x128xf32>
    %15 = tpu.matmul %13, %14, %cst_13 {dimension_numbers = #tpu.dot_dimension_numbers<[1], [0], [0], [1], [0, 0, 1, 1], [], []>} : vector<4x32xf32>, vector<32x128xf32>, vector<4x128xf32> -> vector<4x128xf32>
    %c0_14 = arith.constant 0 : index
    %c0_15 = arith.constant 0 : index
    %16 = vector.load %arg6[%c0_14, %c0_15] : memref<1x128xf32, #tpu.memory_space<vmem>>, vector<1x128xf32>
    %17 = vector.broadcast %16 : vector<1x128xf32> to vector<4x128xf32>
    %18 = arith.addf %15, %17 : vector<4x128xf32>
    %cst_16 = arith.constant 0.000000e+00 : f32
    %19 = vector.broadcast %cst_16 : f32 to vector<4x128xf32>
    %20 = arith.maximumf %18, %19 : vector<4x128xf32>
    %c0_17 = arith.constant 0 : index
    %c0_18 = arith.constant 0 : index
    %21 = vector.load %arg7[%c0_17, %c0_18] : memref<128x256xf32, #tpu.memory_space<vmem>>, vector<128x256xf32>
    %cst_19 = arith.constant dense<0.000000e+00> : vector<4x256xf32>
    %22 = tpu.matmul %20, %21, %cst_19 {dimension_numbers = #tpu.dot_dimension_numbers<[1], [0], [0], [1], [0, 0, 1, 1], [], []>} : vector<4x128xf32>, vector<128x256xf32>, vector<4x256xf32> -> vector<4x256xf32>
    %c0_20 = arith.constant 0 : index
    %c0_21 = arith.constant 0 : index
    %23 = vector.load %arg8[%c0_20, %c0_21] : memref<1x256xf32, #tpu.memory_space<vmem>>, vector<1x256xf32>
    %24 = vector.broadcast %23 : vector<1x256xf32> to vector<4x256xf32>
    %25 = arith.addf %22, %24 : vector<4x256xf32>
    %26 = vector.extract_strided_slice %25 {offsets = [0, 0], sizes = [4, 128], strides = [1, 1]} : vector<4x256xf32> to vector<4x128xf32>
    %27 = vector.extract_strided_slice %25 {offsets = [0, 128], sizes = [4, 128], strides = [1, 1]} : vector<4x256xf32> to vector<4x128xf32>
    %28 = arith.mulf %26, %12 : vector<4x128xf32>
    %29 = arith.addf %28, %27 : vector<4x128xf32>
    %c0_22 = arith.constant 0 : index
    %c0_23 = arith.constant 0 : index
    %30 = vector.load %arg9[%c0_22, %c0_23] : memref<4x128xf32, #tpu.memory_space<vmem>>, vector<4x128xf32>
    tpu.vector_store %arg9[%c0_22, %c0_23], %29 {strides = array<i32>} : memref<4x128xf32, #tpu.memory_space<vmem>>, vector<4x128xf32>,
    return
  }
  func.func @transform_0(%arg0: i32) -> (i32, i32) {
    %c0_i32 = arith.constant 0 : i32
    %c0_i32_0 = arith.constant 0 : i32
    return %arg0, %c0_i32 : i32, i32
  }
  func.func @transform_1(%arg0: i32) -> (i32, i32) {
    %c0_i32 = arith.constant 0 : i32
    %c0_i32_0 = arith.constant 0 : i32
    return %arg0, %c0_i32 : i32, i32
  }
  func.func @transform_2(%arg0: i32) -> (i32, i32) {
    %c0_i32 = arith.constant 0 : i32
    %c0_i32_0 = arith.constant 0 : i32
    %c0_i32_1 = arith.constant 0 : i32
    return %c0_i32, %c0_i32_0 : i32, i32
  }
  func.func @transform_3(%arg0: i32) -> (i32, i32) {
    %c0_i32 = arith.constant 0 : i32
    %c0_i32_0 = arith.constant 0 : i32
    %c0_i32_1 = arith.constant 0 : i32
    return %c0_i32, %c0_i32_0 : i32, i32
  }
  func.func @transform_4(%arg0: i32) -> (i32, i32) {
    %c0_i32 = arith.constant 0 : i32
    %c0_i32_0 = arith.constant 0 : i32
    %c0_i32_1 = arith.constant 0 : i32
    return %c0_i32, %c0_i32_0 : i32, i32
  }
  func.func @transform_5(%arg0: i32) -> (i32, i32) {
    %c0_i32 = arith.constant 0 : i32
    %c0_i32_0 = arith.constant 0 : i32
    %c0_i32_1 = arith.constant 0 : i32
    return %c0_i32, %c0_i32_0 : i32, i32
  }
  func.func @transform_6(%arg0: i32) -> (i32, i32) {
    %c0_i32 = arith.constant 0 : i32
    %c0_i32_0 = arith.constant 0 : i32
    %c0_i32_1 = arith.constant 0 : i32
    return %c0_i32, %c0_i32_0 : i32, i32
  }
  func.func @transform_7(%arg0: i32) -> (i32, i32) {
    %c0_i32 = arith.constant 0 : i32
    %c0_i32_0 = arith.constant 0 : i32
    %c0_i32_1 = arith.constant 0 : i32
    return %c0_i32, %c0_i32_0 : i32, i32
  }
  func.func @transform_8(%arg0: i32) -> (i32, i32) {
    %c0_i32 = arith.constant 0 : i32
    %c0_i32_0 = arith.constant 0 : i32
    return %arg0, %c0_i32 : i32, i32
  }
}

module attributes {stable_mosaic.version = 11 : i64} {
  func.func @mln_kernel(%arg0: i32, %arg1: memref<4x128xf32, #tpu.memory_space<vmem>>, %arg2: memref<4x32xf32, #tpu.memory_space<vmem>>, %arg3: memref<128x4xf32, #tpu.memory_space<vmem>>, %arg4: memref<4x128xf32, #tpu.memory_space<vmem>>, %arg5: memref<32x128xf32, #tpu.memory_space<vmem>>, %arg6: memref<1x128xf32, #tpu.memory_space<vmem>>, %arg7: memref<128x256xf32, #tpu.memory_space<vmem>>, %arg8: memref<1x256xf32, #tpu.memory_space<vmem>>, %arg9: memref<4x128xf32, #tpu.memory_space<vmem>>) attributes {dimension_semantics = [#tpu.dimension_semantics<parallel>], iteration_bounds = array<i64: 1>, scalar_prefetch = 0 : i64, scratch_operands = 0 : i64, tpu.core_type = #tpu.core_type<tc>, window_params = [{transform_indices = @transform_0, window_bounds = array<i64: 4, 128>}, {transform_indices = @transform_1, window_bounds = array<i64: 4, 32>}, {pipeline_mode = #tpu.pipeline_mode<synchronous>, transform_indices = @transform_2, window_bounds = array<i64: 128, 4>}, {pipeline_mode = #tpu.pipeline_mode<synchronous>, transform_indices = @transform_3, window_bounds = array<i64: 4, 128>}, {pipeline_mode = #tpu.pipeline_mode<synchronous>, transform_indices = @transform_4, window_bounds = array<i64: 32, 128>}, {pipeline_mode = #tpu.pipeline_mode<synchronous>, transform_indices = @transform_5, window_bounds = array<i64: 1, 128>}, {pipeline_mode = #tpu.pipeline_mode<synchronous>, transform_indices = @transform_6, window_bounds = array<i64: 128, 256>}, {pipeline_mode = #tpu.pipeline_mode<synchronous>, transform_indices = @transform_7, window_bounds = array<i64: 1, 256>}, {transform_indices = @transform_8, window_bounds = array<i64: 4, 128>}]} {
    %c0 = arith.constant 0 : index
    %c0_0 = arith.constant 0 : index
    %0 = vector.load %arg1[%c0, %c0_0] : memref<4x128xf32, #tpu.memory_space<vmem>>, vector<4x128xf32>
    %c0_1 = arith.constant 0 : index
    %c0_2 = arith.constant 0 : index
    %1 = vector.load %arg3[%c0_1, %c0_2] : memref<128x4xf32, #tpu.memory_space<vmem>>, vector<128x4xf32>
    %c0_3 = arith.constant 0 : index
    %c0_4 = arith.constant 0 : index
    %2 = vector.load %arg4[%c0_3, %c0_4] : memref<4x128xf32, #tpu.memory_space<vmem>>, vector<4x128xf32>
    %cst = arith.constant dense<0.000000e+00> : vector<4x4xf32>
    %3 = tpu.matmul %0, %1, %cst {dimension_numbers = #tpu.dot_dimension_numbers<[1], [0], [0], [1], [0, 0, 1, 1], [], []>} : vector<4x128xf32>, vector<128x4xf32>, vector<4x4xf32> -> vector<4x4xf32>
    %cst_5 = arith.constant dense<0.000000e+00> : vector<4x128xf32>
    %4 = tpu.matmul %3, %2, %cst_5 {dimension_numbers = #tpu.dot_dimension_numbers<[1], [0], [0], [1], [0, 0, 1, 1], [], []>} : vector<4x4xf32>, vector<4x128xf32>, vector<4x128xf32> -> vector<4x128xf32>
    %5 = arith.subf %0, %4 : vector<4x128xf32>
    %6 = arith.mulf %5, %5 : vector<4x128xf32>
    %cst_6 = arith.constant dense<0.000000e+00> : vector<4x4xf32>
    %7 = tpu.matmul %6, %1, %cst_6 {dimension_numbers = #tpu.dot_dimension_numbers<[1], [0], [0], [1], [0, 0, 1, 1], [], []>} : vector<4x128xf32>, vector<128x4xf32>, vector<4x4xf32> -> vector<4x4xf32>
    %cst_7 = arith.constant 9.99999974E-6 : f32
    %8 = vector.broadcast %cst_7 : f32 to vector<4x4xf32>
    %9 = arith.addf %7, %8 : vector<4x4xf32>
    %10 = math.rsqrt %9 : vector<4x4xf32>
    %cst_8 = arith.constant dense<0.000000e+00> : vector<4x128xf32>
    %11 = tpu.matmul %10, %2, %cst_8 {dimension_numbers = #tpu.dot_dimension_numbers<[1], [0], [0], [1], [0, 0, 1, 1], [], []>} : vector<4x4xf32>, vector<4x128xf32>, vector<4x128xf32> -> vector<4x128xf32>
    %12 = arith.mulf %5, %11 : vector<4x128xf32>
    %c0_9 = arith.constant 0 : index
    %c0_10 = arith.constant 0 : index
    %13 = vector.load %arg2[%c0_9, %c0_10] : memref<4x32xf32, #tpu.memory_space<vmem>>, vector<4x32xf32>
    %c0_11 = arith.constant 0 : index
    %c0_12 = arith.constant 0 : index
    %14 = vector.load %arg5[%c0_11, %c0_12] : memref<32x128xf32, #tpu.memory_space<vmem>>, vector<32x128xf32>
    %cst_13 = arith.constant dense<0.000000e+00> : vector<4x128xf32>
    %15 = tpu.matmul %13, %14, %cst_13 {dimension_numbers = #tpu.dot_dimension_numbers<[1], [0], [0], [1], [0, 0, 1, 1], [], []>} : vector<4x32xf32>, vector<32x128xf32>, vector<4x128xf32> -> vector<4x128xf32>
    %c0_14 = arith.constant 0 : index
    %c0_15 = arith.constant 0 : index
    %16 = vector.load %arg6[%c0_14, %c0_15] : memref<1x128xf32, #tpu.memory_space<vmem>>, vector<1x128xf32>
    %17 = vector.broadcast %16 : vector<1x128xf32> to vector<4x128xf32>
    %18 = arith.addf %15, %17 : vector<4x128xf32>
    %cst_16 = arith.constant 0.000000e+00 : f32
    %19 = vector.broadcast %cst_16 : f32 to vector<4x128xf32>
    %20 = arith.maximumf %18, %19 : vector<4x128xf32>
    %c0_17 = arith.constant 0 : index
    %c0_18 = arith.constant 0 : index
    %21 = vector.load %arg7[%c0_17, %c0_18] : memref<128x256xf32, #tpu.memory_space<vmem>>, vector<128x256xf32>
    %cst_19 = arith.constant dense<0.000000e+00> : vector<4x256xf32>
    %22 = tpu.matmul %20, %21, %cst_19 {dimension_numbers = #tpu.dot_dimension_numbers<[1], [0], [0], [1], [0, 0, 1, 1], [], []>} : vector<4x128xf32>, vector<128x256xf32>, vector<4x256xf32> -> vector<4x256xf32>
    %c0_20 = arith.constant 0 : index
    %c0_21 = arith.constant 0 : index
    %23 = vector.load %arg8[%c0_20, %c0_21] : memref<1x256xf32, #tpu.memory_space<vmem>>, vector<1x256xf32>
    %24 = vector.broadcast %23 : vector<1x256xf32> to vector<4x256xf32>
    %25 = arith.addf %22, %24 : vector<4x256xf32>
    %26 = vector.extract_strided_slice %25 {offsets = [0, 0], sizes = [4, 128], strides = [1, 1]} : vector<4x256xf32> to vector<4x128xf32>
    %27 = vector.extract_strided_slice %25 {offsets = [0, 128], sizes = [4, 128], strides = [1, 1]} : vector<4x256xf32> to vector<4x128xf32>
    %28 = arith.mulf %26, %12 : vector<4x128xf32>
    %29 = arith.addf %28, %27 : vector<4x128xf32>
    %c0_22 = arith.constant 0 : index
    %c0_23 = arith.constant 0 : index
    %30 = vector.load %arg9[%c0_22, %c0_23] : memref<4x128xf32, #tpu.memory_space<vmem>>, vector<4x128xf32>
    tpu.vector_store %arg9[%c0_22, %c0_23], %29 {strides = array<i32>} : memref<4x128xf32, #tpu.memory_space<vmem>>, vector<4x128xf32>,
    return
  }
  func.func @transform_0(%arg0: i32) -> (i32, i32) {
    %c0_i32 = arith.constant 0 : i32
    %c0_i32_0 = arith.constant 0 : i32
    return %arg0, %c0_i32 : i32, i32
  }
  func.func @transform_1(%arg0: i32) -> (i32, i32) {
    %c0_i32 = arith.constant 0 : i32
    %c0_i32_0 = arith.constant 0 : i32
    return %arg0, %c0_i32 : i32, i32
  }
  func.func @transform_2(%arg0: i32) -> (i32, i32) {
    %c0_i32 = arith.constant 0 : i32
    %c0_i32_0 = arith.constant 0 : i32
    %c0_i32_1 = arith.constant 0 : i32
    return %c0_i32, %c0_i32_0 : i32, i32
  }
  func.func @transform_3(%arg0: i32) -> (i32, i32) {
    %c0_i32 = arith.constant 0 : i32
    %c0_i32_0 = arith.constant 0 : i32
    %c0_i32_1 = arith.constant 0 : i32
    return %c0_i32, %c0_i32_0 : i32, i32
  }
  func.func @transform_4(%arg0: i32) -> (i32, i32) {
    %c0_i32 = arith.constant 0 : i32
    %c0_i32_0 = arith.constant 0 : i32
    %c0_i32_1 = arith.constant 0 : i32
    return %c0_i32, %c0_i32_0 : i32, i32
  }
  func.func @transform_5(%arg0: i32) -> (i32, i32) {
    %c0_i32 = arith.constant 0 : i32
    %c0_i32_0 = arith.constant 0 : i32
    %c0_i32_1 = arith.constant 0 : i32
    return %c0_i32, %c0_i32_0 : i32, i32
  }
  func.func @transform_6(%arg0: i32) -> (i32, i32) {
    %c0_i32 = arith.constant 0 : i32
    %c0_i32_0 = arith.constant 0 : i32
    %c0_i32_1 = arith.constant 0 : i32
    return %c0_i32, %c0_i32_0 : i32, i32
  }
  func.func @transform_7(%arg0: i32) -> (i32, i32) {
    %c0_i32 = arith.constant 0 : i32
    %c0_i32_0 = arith.constant 0 : i32
    %c0_i32_1 = arith.constant 0 : i32
    return %c0_i32, %c0_i32_0 : i32, i32
  }
  func.func @transform_8(%arg0: i32) -> (i32, i32) {
    %c0_i32 = arith.constant 0 : i32
    %c0_i32_0 = arith.constant 0 : i32
    return %arg0, %c0_i32 : i32, i32
  }
}

</mosaic_0001>

<llo_original>
// kernel: tpu_custom_call.1
$region0: #{tpu_custom_call.1}
  #allocation0 [shape = 'u32[]', space=smem, size = 0x4, offset = 0x4, fixed_abs, tag = 'smem constant byte address 0x4 - core index']
  #allocation1 [shape = 'u32[144,128]{1,0:T(1,128)}', space=vmem, size = 0x12000, scoped, tag = 'internal scratch']
  %s0 = inlined_call_operand.vmem [shape: f32[4,128], index: 0, kind: input, shape index: {}]
  %s1 = inlined_call_operand.vmem [shape: f32[4,32], index: 1, kind: input, shape index: {}]
  %s2 = inlined_call_operand.vmem [shape: f32[128,4], index: 2, kind: input, shape index: {}]
  %s3 = inlined_call_operand.vmem [shape: f32[4,128], index: 3, kind: input, shape index: {}]
  %s4 = inlined_call_operand.vmem [shape: f32[32,128], index: 4, kind: input, shape index: {}]
  %s5 = inlined_call_operand.vmem [shape: f32[1,128], index: 5, kind: input, shape index: {}]
  %s6 = inlined_call_operand.hbm [shape: f32[128,256], index: 6, kind: input, shape index: {}]
  %s7 = inlined_call_operand.vmem [shape: f32[1,256], index: 7, kind: input, shape index: {}]
  %s8 = inlined_call_operand.hbm [shape: f32[4,128], index: 8, kind: output, shape index: {}]
  %s9 = sld [smem:[#allocation0]]
  $region46: #{tpu_custom_call.1} parent=0
    _
  %s11 = ssub.s32 1, %s9
  %s12 = scalar_select 0, %s11, %s9
  $region1: #{tpu_custom_call.1} parent=0
    #allocation2 [shape = 'u8[131072]{0}', space=vmem, size = 0x20000, scoped, tag = 'input window, operand 6, single buffered']
    #allocation3 [shape = 's32[1]{0}', space=sflag, size = 0x4, scoped, tag = 'scoped memory for tpu_custom_call.1']
    #allocation4 [shape = 's32[1]{0}', space=sflag, size = 0x4, scoped, tag = 'scoped memory for tpu_custom_call.1']
    #allocation5 [shape = 'u8[2048]{0}', space=vmem, size = 0x800, scoped, tag = 'output window, operand 0, single buffered']
    %13 = vsyncpa [#allocation3], 0
    %14 = vsyncpa [#allocation4], 0
    // Predicated region
    $region2: #{tpu_custom_call.1} parent=1 // pred_check
      _
    $region3: #{tpu_custom_call.1} parent=1 // pred_check_branch
      %16 = sbr.rel (0) target = $region5
    $region4: #{tpu_custom_call.1} parent=1 // pred_region
      _
    $region5: #{tpu_custom_call.1} parent=1 // pred_fallthru
      _
    // Predicated region
    $region6: #{tpu_custom_call.1} parent=1 // pred_check
      _
    $region7: #{tpu_custom_call.1} parent=1 // pred_check_branch
      %18 = sbr.rel (0) target = $region9
    $region8: #{tpu_custom_call.1} parent=1 // pred_region
      _
    $region9: #{tpu_custom_call.1} parent=1 // pred_fallthru
      _
    // Predicated region
    $region10: #{tpu_custom_call.1} parent=1 // pred_check
      _
    $region11: #{tpu_custom_call.1} parent=1 // pred_check_branch
      %20 = sbr.rel (0) target = $region13
    $region12: #{tpu_custom_call.1} parent=1 // pred_region
      _
    $region13: #{tpu_custom_call.1} parent=1 // pred_fallthru
      _
    // Predicated region
    $region14: #{tpu_custom_call.1} parent=1 // pred_check
      _
    $region15: #{tpu_custom_call.1} parent=1 // pred_check_branch
      %22 = sbr.rel (0) target = $region17
    $region16: #{tpu_custom_call.1} parent=1 // pred_region
      _
    $region17: #{tpu_custom_call.1} parent=1 // pred_fallthru
      _
    // Predicated region
    $region18: #{tpu_custom_call.1} parent=1 // pred_check
      _
    $region19: #{tpu_custom_call.1} parent=1 // pred_check_branch
      %24 = sbr.rel (0) target = $region21
    $region20: #{tpu_custom_call.1} parent=1 // pred_region
      _
    $region21: #{tpu_custom_call.1} parent=1 // pred_fallthru
      _
    // Predicated region
    $region22: #{tpu_custom_call.1} parent=1 // pred_check
      _
    $region23: #{tpu_custom_call.1} parent=1 // pred_check_branch
      %26 = sbr.rel (0) target = $region25
    $region24: #{tpu_custom_call.1} parent=1 // pred_region
      _
    $region25: #{tpu_custom_call.1} parent=1 // pred_fallthru
      _
    // Predicated region
    $region26: #{tpu_custom_call.1} parent=1 // pred_check
      _
    $region27: #{tpu_custom_call.1} parent=1 // pred_check_branch
      %28 = sbr.rel (0) target = $region29
    $region28: #{tpu_custom_call.1} parent=1 // pred_region
      %s30 = ssub.s32 4096, 4096
      %31 = vsyncadd [#allocation3], %s30
      %s32 = sshll.u32 [#allocation2], 4
      %s33 = int_to_ptr.vmem [resolvable:$true] %s32
      %38 = dma.hbm_to_vmem [thread:$0]  %s6, 4096, %s33, [#allocation3], 256, 256, 16
    $region29: #{tpu_custom_call.1} parent=1 // pred_fallthru
      _
    // Predicated region
    $region30: #{tpu_custom_call.1} parent=1 // pred_check
      _
    $region31: #{tpu_custom_call.1} parent=1 // pred_check_branch
      %40 = sbr.rel (0) target = $region33
    $region32: #{tpu_custom_call.1} parent=1 // pred_region
      _
    $region33: #{tpu_custom_call.1} parent=1 // pred_fallthru
      _
    // Predicated region
    $region34: #{tpu_custom_call.1} parent=1 // pred_check
      _
    $region35: #{tpu_custom_call.1} parent=1 // pred_check_branch
      %42 = sbr.rel (0) target = $region37
    $region36: #{tpu_custom_call.1} parent=1 // pred_region
      %43 = dma.done [#allocation3], 4096
    $region37: #{tpu_custom_call.1} parent=1 // pred_fallthru
      _
    %v44 = vld [vmem:[%s0] sm:$0xf]
    %v45 = vld [vmem:[%s2] sm:$0xff]
    %v46 = vld [vmem:[%s2 + $0x8] sm:$0xff]
    %v47 = vld [vmem:[%s2 + $0x10] sm:$0xff]
    %v48 = vld [vmem:[%s2 + $0x18] sm:$0xff]
    %v49 = vld [vmem:[%s2 + $0x20] sm:$0xff]
    %v50 = vld [vmem:[%s2 + $0x28] sm:$0xff]
    %v51 = vld [vmem:[%s2 + $0x30] sm:$0xff]
    %v52 = vld [vmem:[%s2 + $0x38] sm:$0xff]
    %v53 = vld [vmem:[%s2 + $0x40] sm:$0xff]
    %v54 = vld [vmem:[%s2 + $0x48] sm:$0xff]
    %v55 = vld [vmem:[%s2 + $0x50] sm:$0xff]
    %v56 = vld [vmem:[%s2 + $0x58] sm:$0xff]
    %v57 = vld [vmem:[%s2 + $0x60] sm:$0xff]
    %v58 = vld [vmem:[%s2 + $0x68] sm:$0xff]
    %v59 = vld [vmem:[%s2 + $0x70] sm:$0xff]
    %v60 = vld [vmem:[%s2 + $0x78] sm:$0xff]
    %v61 = vld [vmem:[%s3] sm:$0xf]
    %62 = vmatprep.subr.mxu0 0.0
    %63 = vmatpush1.msra.mxu0 %v45
    %64 = vmatprep.subr.mxu0 0.0
    %65 = vmatpush1.msra.mxu0 %v46
    %66 = vmatprep.subr.mxu0 0.0
    %67 = vmatpush1.msra.mxu0 %v47
    %68 = vmatprep.subr.mxu0 0.0
    %69 = vmatpush1.msra.mxu0 %v48
    %70 = vmatprep.subr.mxu0 0.0
    %71 = vmatpush1.msra.mxu0 %v49
    %72 = vmatprep.subr.mxu0 0.0
    %73 = vmatpush1.msra.mxu0 %v50
    %74 = vmatprep.subr.mxu0 0.0
    %75 = vmatpush1.msra.mxu0 %v51
    %76 = vmatprep.subr.mxu0 0.0
    %77 = vmatpush1.msra.mxu0 %v52
    %78 = vmatprep.subr.mxu0 0.0
    %79 = vmatpush1.msra.mxu0 %v53
    %80 = vmatprep.subr.mxu0 0.0
    %81 = vmatpush1.msra.mxu0 %v54
    %82 = vmatprep.subr.mxu0 0.0
    %83 = vmatpush1.msra.mxu0 %v55
    %84 = vmatprep.subr.mxu0 0.0
    %85 = vmatpush1.msra.mxu0 %v56
    %86 = vmatprep.subr.mxu0 0.0
    %87 = vmatpush1.msra.mxu0 %v57
    %88 = vmatprep.subr.mxu0 0.0
    %89 = vmatpush1.msra.mxu0 %v58
    %90 = vmatprep.subr.mxu0 0.0
    %91 = vmatpush1.msra.mxu0 %v59
    %92 = vmatprep.subr.mxu0 0.0
    %93 = vmatpush1.msra.mxu0 %v60
    %94 = vmatprep.subr.mxu0 0.0
    %95 = vmatpush1.msra.mxu0 0.0
    %96 = vmatprep.subr.mxu0 0.0
    %97 = vmatpush1.msra.mxu0 0.0
    %98 = vmatprep.subr.mxu0 0.0
    %99 = vmatpush1.msra.mxu0 0.0
    %100 = vmatprep.subr.mxu0 0.0
    %101 = vmatpush1.msra.mxu0 0.0
    %102 = vmatprep.subr.mxu0 0.0
    %103 = vmatpush1.msra.mxu0 0.0
    %104 = vmatprep.subr.mxu0 0.0
    %105 = vmatpush1.msra.mxu0 0.0
    %106 = vmatprep.subr.mxu0 0.0
    %107 = vmatpush1.msra.mxu0 0.0
    %108 = vmatprep.subr.mxu0 0.0
    %109 = vmatpush1.msra.mxu0 0.0
    %110 = vmatprep.subr.mxu0 0.0
    %111 = vmatpush1.msra.mxu0 0.0
    %112 = vmatprep.subr.mxu0 0.0
    %113 = vmatpush1.msra.mxu0 0.0
    %114 = vmatprep.subr.mxu0 0.0
    %115 = vmatpush1.msra.mxu0 0.0
    %116 = vmatprep.subr.mxu0 0.0
    %117 = vmatpush1.msra.mxu0 0.0
    %118 = vmatprep.subr.mxu0 0.0
    %119 = vmatpush1.msra.mxu0 0.0
    %120 = vmatprep.subr.mxu0 0.0
    %121 = vmatpush1.msra.mxu0 0.0
    %122 = vmatprep.subr.mxu0 0.0
    %123 = vmatpush1.msra.mxu0 0.0
    %124 = vmatprep.subr.mxu0 0.0
    %125 = vmatpush1.msra.mxu0 0.0
    %126 = vmatprep.mubr.f32.mxu0 0.0
    %127 = vmatmul.mubr.f32.gmra.mrb[0].mxu0 %v44
    %v128 = vpop.f32.mrb[0].mxu0
    %v129 = vadd.f32 0.0, %v128
    %v130 = vpop.f32.mrb[0].mxu0
    %131 = vdwg.mxu0
    %vm132 = vcmask 31744
    %v134 = vsel %vm132, %v129, 0
    %vm136 = vcmask 1043456
    %v138 = vsel %vm136, %v61, 0
    %140 = vmatprep.subr.mxu0 0.0
    %141 = vmatpush1.msra.mxu0 %v138
    %142 = vmatprep.subr.mxu0 0.0
    %143 = vmatpush1.msra.mxu0 0.0
    %144 = vmatprep.subr.mxu0 0.0
    %145 = vmatpush1.msra.mxu0 0.0
    %146 = vmatprep.subr.mxu0 0.0
    %147 = vmatpush1.msra.mxu0 0.0
    %148 = vmatprep.subr.mxu0 0.0
    %149 = vmatpush1.msra.mxu0 0.0
    %150 = vmatprep.subr.mxu0 0.0
    %151 = vmatpush1.msra.mxu0 0.0
    %152 = vmatprep.subr.mxu0 0.0
    %153 = vmatpush1.msra.mxu0 0.0
    %154 = vmatprep.subr.mxu0 0.0
    %155 = vmatpush1.msra.mxu0 0.0
    %156 = vmatprep.subr.mxu0 0.0
    %157 = vmatpush1.msra.mxu0 0.0
    %158 = vmatprep.subr.mxu0 0.0
    %159 = vmatpush1.msra.mxu0 0.0
    %160 = vmatprep.subr.mxu0 0.0
    %161 = vmatpush1.msra.mxu0 0.0
    %162 = vmatprep.subr.mxu0 0.0
    %163 = vmatpush1.msra.mxu0 0.0
    %164 = vmatprep.subr.mxu0 0.0
    %165 = vmatpush1.msra.mxu0 0.0
    %166 = vmatprep.subr.mxu0 0.0
    %167 = vmatpush1.msra.mxu0 0.0
    %168 = vmatprep.subr.mxu0 0.0
    %169 = vmatpush1.msra.mxu0 0.0
    %170 = vmatprep.subr.mxu0 0.0
    %171 = vmatpush1.msra.mxu0 0.0
    %172 = vmatprep.subr.mxu0 0.0
    %173 = vmatpush1.msra.mxu0 0.0
    %174 = vmatprep.subr.mxu0 0.0
    %175 = vmatpush1.msra.mxu0 0.0
    %176 = vmatprep.subr.mxu0 0.0
    %177 = vmatpush1.msra.mxu0 0.0
    %178 = vmatprep.subr.mxu0 0.0
    %179 = vmatpush1.msra.mxu0 0.0
    %180 = vmatprep.subr.mxu0 0.0
    %181 = vmatpush1.msra.mxu0 0.0
    %182 = vmatprep.subr.mxu0 0.0
    %183 = vmatpush1.msra.mxu0 0.0
    %184 = vmatprep.subr.mxu0 0.0
    %185 = vmatpush1.msra.mxu0 0.0
    %186 = vmatprep.subr.mxu0 0.0
    %187 = vmatpush1.msra.mxu0 0.0
    %188 = vmatprep.subr.mxu0 0.0
    %189 = vmatpush1.msra.mxu0 0.0
    %190 = vmatprep.subr.mxu0 0.0
    %191 = vmatpush1.msra.mxu0 0.0
    %192 = vmatprep.subr.mxu0 0.0
    %193 = vmatpush1.msra.mxu0 0.0
    %194 = vmatprep.subr.mxu0 0.0
    %195 = vmatpush1.msra.mxu0 0.0
    %196 = vmatprep.subr.mxu0 0.0
    %197 = vmatpush1.msra.mxu0 0.0
    %198 = vmatprep.subr.mxu0 0.0
    %199 = vmatpush1.msra.mxu0 0.0
    %200 = vmatprep.subr.mxu0 0.0
    %201 = vmatpush1.msra.mxu0 0.0
    %202 = vmatprep.subr.mxu0 0.0
    %203 = vmatpush1.msra.mxu0 0.0
    %204 = vmatprep.mubr.f32.mxu0 0.0
    %205 = vmatmul.mubr.f32.gmra.mrb[0].mxu0 %v134
    %v206 = vpop.f32.mrb[0].mxu0
    %v207 = vadd.f32 0.0, %v206
    %v208 = vpop.f32.mrb[0].mxu0
    %209 = vdwg.mxu0
    %v210 = vsub.f32 %v44, %v207
    %v211 = vmul.f32 %v210, %v210
    %212 = vmatprep.subr.mxu0 0.0
    %213 = vmatpush1.msra.mxu0 %v45
    %214 = vmatprep.subr.mxu0 0.0
    %215 = vmatpush1.msra.mxu0 %v46
    %216 = vmatprep.subr.mxu0 0.0
    %217 = vmatpush1.msra.mxu0 %v47
    %218 = vmatprep.subr.mxu0 0.0
    %219 = vmatpush1.msra.mxu0 %v48
    %220 = vmatprep.subr.mxu0 0.0
    %221 = vmatpush1.msra.mxu0 %v49
    %222 = vmatprep.subr.mxu0 0.0
    %223 = vmatpush1.msra.mxu0 %v50
    %224 = vmatprep.subr.mxu0 0.0
    %225 = vmatpush1.msra.mxu0 %v51
    %226 = vmatprep.subr.mxu0 0.0
    %227 = vmatpush1.msra.mxu0 %v52
    %228 = vmatprep.subr.mxu0 0.0
    %229 = vmatpush1.msra.mxu0 %v53
    %230 = vmatprep.subr.mxu0 0.0
    %231 = vmatpush1.msra.mxu0 %v54
    %232 = vmatprep.subr.mxu0 0.0
    %233 = vmatpush1.msra.mxu0 %v55
    %234 = vmatprep.subr.mxu0 0.0
    %235 = vmatpush1.msra.mxu0 %v56
    %236 = vmatprep.subr.mxu0 0.0
    %237 = vmatpush1.msra.mxu0 %v57
    %238 = vmatprep.subr.mxu0 0.0
    %239 = vmatpush1.msra.mxu0 %v58
    %240 = vmatprep.subr.mxu0 0.0
    %241 = vmatpush1.msra.mxu0 %v59
    %242 = vmatprep.subr.mxu0 0.0
    %243 = vmatpush1.msra.mxu0 %v60
    %244 = vmatprep.subr.mxu0 0.0
    %245 = vmatpush1.msra.mxu0 0.0
    %246 = vmatprep.subr.mxu0 0.0
    %247 = vmatpush1.msra.mxu0 0.0
    %248 = vmatprep.subr.mxu0 0.0
    %249 = vmatpush1.msra.mxu0 0.0
    %250 = vmatprep.subr.mxu0 0.0
    %251 = vmatpush1.msra.mxu0 0.0
    %252 = vmatprep.subr.mxu0 0.0
    %253 = vmatpush1.msra.mxu0 0.0
    %254 = vmatprep.subr.mxu0 0.0
    %255 = vmatpush1.msra.mxu0 0.0
    %256 = vmatprep.subr.mxu0 0.0
    %257 = vmatpush1.msra.mxu0 0.0
    %258 = vmatprep.subr.mxu0 0.0
    %259 = vmatpush1.msra.mxu0 0.0
    %260 = vmatprep.subr.mxu0 0.0
    %261 = vmatpush1.msra.mxu0 0.0
    %262 = vmatprep.subr.mxu0 0.0
    %263 = vmatpush1.msra.mxu0 0.0
    %264 = vmatprep.subr.mxu0 0.0
    %265 = vmatpush1.msra.mxu0 0.0
    %266 = vmatprep.subr.mxu0 0.0
    %267 = vmatpush1.msra.mxu0 0.0
    %268 = vmatprep.subr.mxu0 0.0
    %269 = vmatpush1.msra.mxu0 0.0
    %270 = vmatprep.subr.mxu0 0.0
    %271 = vmatpush1.msra.mxu0 0.0
    %272 = vmatprep.subr.mxu0 0.0
    %273 = vmatpush1.msra.mxu0 0.0
    %274 = vmatprep.subr.mxu0 0.0
    %275 = vmatpush1.msra.mxu0 0.0
    %276 = vmatprep.mubr.f32.mxu0 0.0
    %277 = vmatmul.mubr.f32.gmra.mrb[0].mxu0 %v211
    %v278 = vpop.f32.mrb[0].mxu0
    %v279 = vadd.f32 1e-05, %v278
    %v280 = vpop.f32.mrb[0].mxu0
    %281 = vdwg.mxu0
    %v282 = vrsqrt.pop %v279
    %v284 = vsel %vm132, %v282, 0
    %286 = vmatprep.subr.mxu0 0.0
    %287 = vmatpush1.msra.mxu0 %v138
    %288 = vmatprep.subr.mxu0 0.0
    %289 = vmatpush1.msra.mxu0 0.0
    %290 = vmatprep.subr.mxu0 0.0
    %291 = vmatpush1.msra.mxu0 0.0
    %292 = vmatprep.subr.mxu0 0.0
    %293 = vmatpush1.msra.mxu0 0.0
    %294 = vmatprep.subr.mxu0 0.0
    %295 = vmatpush1.msra.mxu0 0.0
    %296 = vmatprep.subr.mxu0 0.0
    %297 = vmatpush1.msra.mxu0 0.0
    %298 = vmatprep.subr.mxu0 0.0
    %299 = vmatpush1.msra.mxu0 0.0
    %300 = vmatprep.subr.mxu0 0.0
    %301 = vmatpush1.msra.mxu0 0.0
    %302 = vmatprep.subr.mxu0 0.0
    %303 = vmatpush1.msra.mxu0 0.0
    %304 = vmatprep.subr.mxu0 0.0
    %305 = vmatpush1.msra.mxu0 0.0
    %306 = vmatprep.subr.mxu0 0.0
    %307 = vmatpush1.msra.mxu0 0.0
    %308 = vmatprep.subr.mxu0 0.0
    %309 = vmatpush1.msra.mxu0 0.0
    %310 = vmatprep.subr.mxu0 0.0
    %311 = vmatpush1.msra.mxu0 0.0
    %312 = vmatprep.subr.mxu0 0.0
    %313 = vmatpush1.msra.mxu0 0.0
    %314 = vmatprep.subr.mxu0 0.0
    %315 = vmatpush1.msra.mxu0 0.0
    %316 = vmatprep.subr.mxu0 0.0
    %317 = vmatpush1.msra.mxu0 0.0
    %318 = vmatprep.subr.mxu0 0.0
    %319 = vmatpush1.msra.mxu0 0.0
    %320 = vmatprep.subr.mxu0 0.0
    %321 = vmatpush1.msra.mxu0 0.0
    %322 = vmatprep.subr.mxu0 0.0
    %323 = vmatpush1.msra.mxu0 0.0
    %324 = vmatprep.subr.mxu0 0.0
    %325 = vmatpush1.msra.mxu0 0.0
    %326 = vmatprep.subr.mxu0 0.0
    %327 = vmatpush1.msra.mxu0 0.0
    %328 = vmatprep.subr.mxu0 0.0
    %329 = vmatpush1.msra.mxu0 0.0
    %330 = vmatprep.subr.mxu0 0.0
    %331 = vmatpush1.msra.mxu0 0.0
    %332 = vmatprep.subr.mxu0 0.0
    %333 = vmatpush1.msra.mxu0 0.0
    %334 = vmatprep.subr.mxu0 0.0
    %335 = vmatpush1.msra.mxu0 0.0
    %336 = vmatprep.subr.mxu0 0.0
    %337 = vmatpush1.msra.mxu0 0.0
    %338 = vmatprep.subr.mxu0 0.0
    %339 = vmatpush1.msra.mxu0 0.0
    %340 = vmatprep.subr.mxu0 0.0
    %341 = vmatpush1.msra.mxu0 0.0
    %342 = vmatprep.subr.mxu0 0.0
    %343 = vmatpush1.msra.mxu0 0.0
    %344 = vmatprep.subr.mxu0 0.0
    %345 = vmatpush1.msra.mxu0 0.0
    %346 = vmatprep.subr.mxu0 0.0
    %347 = vmatpush1.msra.mxu0 0.0
    %348 = vmatprep.subr.mxu0 0.0
    %349 = vmatpush1.msra.mxu0 0.0
    %350 = vmatprep.mubr.f32.mxu0 0.0
    %351 = vmatmul.mubr.f32.gmra.mrb[0].mxu0 %v284
    %v352 = vpop.f32.mrb[0].mxu0
    %v353 = vadd.f32 0.0, %v352
    %v354 = vpop.f32.mrb[0].mxu0
    %355 = vdwg.mxu0
    %v356 = vmul.f32 %v210, %v353
    %v357 = vld [vmem:[%s1] sm:$0xf]
    %v358 = vld [vmem:[%s4] sm:$0xff]
    %v359 = vld [vmem:[%s4 + $0x8] sm:$0xff]
    %v360 = vld [vmem:[%s4 + $0x10] sm:$0xff]
    %v361 = vld [vmem:[%s4 + $0x18] sm:$0xff]
    %v362 = vld [vmem:[%s5] sm:$0x1]
    %v364 = vlaneseq
    %v365 = vshrl.u32 %v364, 7
    %v366 = vsub.s32 0, %v365
    %v367 = vrot.slane %v362, %v366
    %vm369 = vcmask 261120
    %v371 = vsel %vm369, %v357, 0
    %373 = vmatprep.subr.mxu0 0.0
    %374 = vmatpush1.msra.mxu0 %v358
    %375 = vmatprep.subr.mxu0 0.0
    %376 = vmatpush1.msra.mxu0 %v359
    %377 = vmatprep.subr.mxu0 0.0
    %378 = vmatpush1.msra.mxu0 %v360
    %379 = vmatprep.subr.mxu0 0.0
    %380 = vmatpush1.msra.mxu0 %v361
    %381 = vmatprep.subr.mxu0 0.0
    %382 = vmatpush1.msra.mxu0 0.0
    %383 = vmatprep.subr.mxu0 0.0
    %384 = vmatpush1.msra.mxu0 0.0
    %385 = vmatprep.subr.mxu0 0.0
    %386 = vmatpush1.msra.mxu0 0.0
    %387 = vmatprep.subr.mxu0 0.0
    %388 = vmatpush1.msra.mxu0 0.0
    %389 = vmatprep.subr.mxu0 0.0
    %390 = vmatpush1.msra.mxu0 0.0
    %391 = vmatprep.subr.mxu0 0.0
    %392 = vmatpush1.msra.mxu0 0.0
    %393 = vmatprep.subr.mxu0 0.0
    %394 = vmatpush1.msra.mxu0 0.0
    %395 = vmatprep.subr.mxu0 0.0
    %396 = vmatpush1.msra.mxu0 0.0
    %397 = vmatprep.subr.mxu0 0.0
    %398 = vmatpush1.msra.mxu0 0.0
    %399 = vmatprep.subr.mxu0 0.0
    %400 = vmatpush1.msra.mxu0 0.0
    %401 = vmatprep.subr.mxu0 0.0
    %402 = vmatpush1.msra.mxu0 0.0
    %403 = vmatprep.subr.mxu0 0.0
    %404 = vmatpush1.msra.mxu0 0.0
    %405 = vmatprep.subr.mxu0 0.0
    %406 = vmatpush1.msra.mxu0 0.0
    %407 = vmatprep.subr.mxu0 0.0
    %408 = vmatpush1.msra.mxu0 0.0
    %409 = vmatprep.subr.mxu0 0.0
    %410 = vmatpush1.msra.mxu0 0.0
    %411 = vmatprep.subr.mxu0 0.0
    %412 = vmatpush1.msra.mxu0 0.0
    %413 = vmatprep.subr.mxu0 0.0
    %414 = vmatpush1.msra.mxu0 0.0
    %415 = vmatprep.subr.mxu0 0.0
    %416 = vmatpush1.msra.mxu0 0.0
    %417 = vmatprep.subr.mxu0 0.0
    %418 = vmatpush1.msra.mxu0 0.0
    %419 = vmatprep.subr.mxu0 0.0
    %420 = vmatpush1.msra.mxu0 0.0
    %421 = vmatprep.subr.mxu0 0.0
    %422 = vmatpush1.msra.mxu0 0.0
    %423 = vmatprep.subr.mxu0 0.0
    %424 = vmatpush1.msra.mxu0 0.0
    %425 = vmatprep.subr.mxu0 0.0
    %426 = vmatpush1.msra.mxu0 0.0
    %427 = vmatprep.subr.mxu0 0.0
    %428 = vmatpush1.msra.mxu0 0.0
    %429 = vmatprep.subr.mxu0 0.0
    %430 = vmatpush1.msra.mxu0 0.0
    %431 = vmatprep.subr.mxu0 0.0
    %432 = vmatpush1.msra.mxu0 0.0
    %433 = vmatprep.subr.mxu0 0.0
    %434 = vmatpush1.msra.mxu0 0.0
    %435 = vmatprep.subr.mxu0 0.0
    %436 = vmatpush1.msra.mxu0 0.0
    %437 = vmatprep.mubr.f32.mxu0 0.0
    %438 = vmatmul.mubr.f32.gmra.mrb[0].mxu0 %v371
    %v439 = vpop.f32.mrb[0].mxu0
    %v440 = vadd.f32 %v367, %v439
    %v441 = vpop.f32.mrb[0].mxu0
    %442 = vdwg.mxu0
    %v443 = vmax.f32 %v440, 0.0
    %v444 = vld [vmem:[#allocation2] sm:$0xff]
    %v445 = vld [vmem:[#allocation2 + $0x8] sm:$0xff]
    %v446 = vld [vmem:[#allocation2 + $0x10] sm:$0xff]
    %v447 = vld [vmem:[#allocation2 + $0x18] sm:$0xff]
    %v448 = vld [vmem:[#allocation2 + $0x20] sm:$0xff]
    %v449 = vld [vmem:[#allocation2 + $0x28] sm:$0xff]
    %v450 = vld [vmem:[#allocation2 + $0x30] sm:$0xff]
    %v451 = vld [vmem:[#allocation2 + $0x38] sm:$0xff]
    %v452 = vld [vmem:[#allocation2 + $0x40] sm:$0xff]
    %v453 = vld [vmem:[#allocation2 + $0x48] sm:$0xff]
    %v454 = vld [vmem:[#allocation2 + $0x50] sm:$0xff]
    %v455 = vld [vmem:[#allocation2 + $0x58] sm:$0xff]
    %v456 = vld [vmem:[#allocation2 + $0x60] sm:$0xff]
    %v457 = vld [vmem:[#allocation2 + $0x68] sm:$0xff]
    %v458 = vld [vmem:[#allocation2 + $0x70] sm:$0xff]
    %v459 = vld [vmem:[#allocation2 + $0x78] sm:$0xff]
    %v460 = vld [vmem:[#allocation2 + $0x80] sm:$0xff]
    %v461 = vld [vmem:[#allocation2 + $0x88] sm:$0xff]
    %v462 = vld [vmem:[#allocation2 + $0x90] sm:$0xff]
    %v463 = vld [vmem:[#allocation2 + $0x98] sm:$0xff]
    %v464 = vld [vmem:[#allocation2 + $0xa0] sm:$0xff]
    %v465 = vld [vmem:[#allocation2 + $0xa8] sm:$0xff]
    %v466 = vld [vmem:[#allocation2 + $0xb0] sm:$0xff]
    %v467 = vld [vmem:[#allocation2 + $0xb8] sm:$0xff]
    %v468 = vld [vmem:[#allocation2 + $0xc0] sm:$0xff]
    %v469 = vld [vmem:[#allocation2 + $0xc8] sm:$0xff]
    %v470 = vld [vmem:[#allocation2 + $0xd0] sm:$0xff]
    %v471 = vld [vmem:[#allocation2 + $0xd8] sm:$0xff]
    %v472 = vld [vmem:[#allocation2 + $0xe0] sm:$0xff]
    %v473 = vld [vmem:[#allocation2 + $0xe8] sm:$0xff]
    %v474 = vld [vmem:[#allocation2 + $0xf0] sm:$0xff]
    %v475 = vld [vmem:[#allocation2 + $0xf8] sm:$0xff]
    %v476 = vld [vmem:[%s7] sm:$0x3]
    %v478 = vlaneseq
    %v479 = vshrl.u32 %v478, 7
    %v480 = vsub.s32 0, %v479
    %v481 = vrot.slane %v476, %v480
    %v482 = vlaneseq
    %v483 = vshrl.u32 %v482, 7
    %v484 = vsub.s32 1, %v483
    %v485 = vrot.slane %v476, %v484
    %488 = vmatprep.subr.mxu0 %v445
    %489 = vmatpush1.msra.mxu0 %v444
    %490 = vmatprep.subr.mxu0 %v447
    %491 = vmatpush1.msra.mxu0 %v446
    %492 = vmatprep.subr.mxu0 %v449
    %493 = vmatpush1.msra.mxu0 %v448
    %494 = vmatprep.subr.mxu0 %v451
    %495 = vmatpush1.msra.mxu0 %v450
    %496 = vmatprep.subr.mxu0 %v453
    %497 = vmatpush1.msra.mxu0 %v452
    %498 = vmatprep.subr.mxu0 %v455
    %499 = vmatpush1.msra.mxu0 %v454
    %500 = vmatprep.subr.mxu0 %v457
    %501 = vmatpush1.msra.mxu0 %v456
    %502 = vmatprep.subr.mxu0 %v459
    %503 = vmatpush1.msra.mxu0 %v458
    %504 = vmatprep.subr.mxu0 %v461
    %505 = vmatpush1.msra.mxu0 %v460
    %506 = vmatprep.subr.mxu0 %v463
    %507 = vmatpush1.msra.mxu0 %v462
    %508 = vmatprep.subr.mxu0 %v465
    %509 = vmatpush1.msra.mxu0 %v464
    %510 = vmatprep.subr.mxu0 %v467
    %511 = vmatpush1.msra.mxu0 %v466
    %512 = vmatprep.subr.mxu0 %v469
    %513 = vmatpush1.msra.mxu0 %v468
    %514 = vmatprep.subr.mxu0 %v471
    %515 = vmatpush1.msra.mxu0 %v470
    %516 = vmatprep.subr.mxu0 %v473
    %517 = vmatpush1.msra.mxu0 %v472
    %518 = vmatprep.subr.mxu0 %v475
    %519 = vmatpush1.msra.mxu0 %v474
    %520 = vmatprep.subr.mxu0 0.0
    %521 = vmatpush1.msra.mxu0 0.0
    %522 = vmatprep.subr.mxu0 0.0
    %523 = vmatpush1.msra.mxu0 0.0
    %524 = vmatprep.subr.mxu0 0.0
    %525 = vmatpush1.msra.mxu0 0.0
    %526 = vmatprep.subr.mxu0 0.0
    %527 = vmatpush1.msra.mxu0 0.0
    %528 = vmatprep.subr.mxu0 0.0
    %529 = vmatpush1.msra.mxu0 0.0
    %530 = vmatprep.subr.mxu0 0.0
    %531 = vmatpush1.msra.mxu0 0.0
    %532 = vmatprep.subr.mxu0 0.0
    %533 = vmatpush1.msra.mxu0 0.0
    %534 = vmatprep.subr.mxu0 0.0
    %535 = vmatpush1.msra.mxu0 0.0
    %536 = vmatprep.subr.mxu0 0.0
    %537 = vmatpush1.msra.mxu0 0.0
    %538 = vmatprep.subr.mxu0 0.0
    %539 = vmatpush1.msra.mxu0 0.0
    %540 = vmatprep.subr.mxu0 0.0
    %541 = vmatpush1.msra.mxu0 0.0
    %542 = vmatprep.subr.mxu0 0.0
    %543 = vmatpush1.msra.mxu0 0.0
    %544 = vmatprep.subr.mxu0 0.0
    %545 = vmatpush1.msra.mxu0 0.0
    %546 = vmatprep.subr.mxu0 0.0
    %547 = vmatpush1.msra.mxu0 0.0
    %548 = vmatprep.subr.mxu0 0.0
    %549 = vmatpush1.msra.mxu0 0.0
    %550 = vmatprep.subr.mxu0 0.0
    %551 = vmatpush1.msra.mxu0 0.0
    %552 = vmatprep.mubr.f32.mxu0 0.0
    %553 = vmatmul.mubr.f32.gmra.mrb[0].mxu0 %v443
    %v554 = vpop.f32.mrb[0].mxu0
    %v555 = vadd.f32 %v481, %v554
    %v556 = vpop.f32.mrb[0].mxu0
    %v557 = vadd.f32 %v485, %v556
    %558 = vdwg.mxu0
    %v559 = vmul.f32 %v555, %v356
    %v560 = vadd.f32 %v559, %v557
    %561 = vst [vmem:[#allocation5] sm:$0xf] %v560
    // Predicated region
    $region38: #{tpu_custom_call.1} parent=1 // pred_check
      _
    $region39: #{tpu_custom_call.1} parent=1 // pred_check_branch
      %563 = sbr.rel (0) target = $region41
    $region40: #{tpu_custom_call.1} parent=1 // pred_region
      %s565 = ssub.s32 64, 64
      %566 = vsyncadd [#allocation4], %s565
      %s568 = sshll.u32 [#allocation5], 4
      %s569 = int_to_ptr.vmem [resolvable:$true] %s568
      %571 = dma.vmem_to_hbm [thread:$0]  %s569, 64, %s8, [#allocation4]
    $region41: #{tpu_custom_call.1} parent=1 // pred_fallthru
      _
    // Predicated region
    $region42: #{tpu_custom_call.1} parent=1 // pred_check
      _
    $region43: #{tpu_custom_call.1} parent=1 // pred_check_branch
      %573 = sbr.rel (0) target = $region45
    $region44: #{tpu_custom_call.1} parent=1 // pred_region
      %574 = dma.done [#allocation4], 64
    $region45: #{tpu_custom_call.1} parent=1 // pred_fallthru
      _
    %575 = vsyncpa [#allocation3], 1
    %576 = vsyncpa [#allocation4], 1

// kernel: tpu_custom_call.1
$region0: #{tpu_custom_call.1}
  #allocation0 [shape = 'u32[]', space=smem, size = 0x4, offset = 0x4, fixed_abs, tag = 'smem constant byte address 0x4 - core index']
  #allocation1 [shape = 'u32[144,128]{1,0:T(1,128)}', space=vmem, size = 0x12000, scoped, tag = 'internal scratch']
  %s0 = inlined_call_operand.vmem [shape: f32[4,128], index: 0, kind: input, shape index: {}]
  %s1 = inlined_call_operand.vmem [shape: f32[4,32], index: 1, kind: input, shape index: {}]
  %s2 = inlined_call_operand.vmem [shape: f32[128,4], index: 2, kind: input, shape index: {}]
  %s3 = inlined_call_operand.vmem [shape: f32[4,128], index: 3, kind: input, shape index: {}]
  %s4 = inlined_call_operand.vmem [shape: f32[32,128], index: 4, kind: input, shape index: {}]
  %s5 = inlined_call_operand.vmem [shape: f32[1,128], index: 5, kind: input, shape index: {}]
  %s6 = inlined_call_operand.hbm [shape: f32[128,256], index: 6, kind: input, shape index: {}]
  %s7 = inlined_call_operand.vmem [shape: f32[1,256], index: 7, kind: input, shape index: {}]
  %s8 = inlined_call_operand.hbm [shape: f32[4,128], index: 8, kind: output, shape index: {}]
  %s9 = sld [smem:[#allocation0]]
  $region46: #{tpu_custom_call.1} parent=0
    _
  %s11 = ssub.s32 1, %s9
  %s12 = scalar_select 0, %s11, %s9
  $region1: #{tpu_custom_call.1} parent=0
    #allocation2 [shape = 'u8[131072]{0}', space=vmem, size = 0x20000, scoped, tag = 'input window, operand 6, single buffered']
    #allocation3 [shape = 's32[1]{0}', space=sflag, size = 0x4, scoped, tag = 'scoped memory for tpu_custom_call.1']
    #allocation4 [shape = 's32[1]{0}', space=sflag, size = 0x4, scoped, tag = 'scoped memory for tpu_custom_call.1']
    #allocation5 [shape = 'u8[2048]{0}', space=vmem, size = 0x800, scoped, tag = 'output window, operand 0, single buffered']
    %13 = vsyncpa [#allocation3], 0
    %14 = vsyncpa [#allocation4], 0
    // Predicated region
    $region2: #{tpu_custom_call.1} parent=1 // pred_check
      _
    $region3: #{tpu_custom_call.1} parent=1 // pred_check_branch
      %16 = sbr.rel (0) target = $region5
    $region4: #{tpu_custom_call.1} parent=1 // pred_region
      _
    $region5: #{tpu_custom_call.1} parent=1 // pred_fallthru
      _
    // Predicated region
    $region6: #{tpu_custom_call.1} parent=1 // pred_check
      _
    $region7: #{tpu_custom_call.1} parent=1 // pred_check_branch
      %18 = sbr.rel (0) target = $region9
    $region8: #{tpu_custom_call.1} parent=1 // pred_region
      _
    $region9: #{tpu_custom_call.1} parent=1 // pred_fallthru
      _
    // Predicated region
    $region10: #{tpu_custom_call.1} parent=1 // pred_check
      _
    $region11: #{tpu_custom_call.1} parent=1 // pred_check_branch
      %20 = sbr.rel (0) target = $region13
    $region12: #{tpu_custom_call.1} parent=1 // pred_region
      _
    $region13: #{tpu_custom_call.1} parent=1 // pred_fallthru
      _
    // Predicated region
    $region14: #{tpu_custom_call.1} parent=1 // pred_check
      _
    $region15: #{tpu_custom_call.1} parent=1 // pred_check_branch
      %22 = sbr.rel (0) target = $region17
    $region16: #{tpu_custom_call.1} parent=1 // pred_region
      _
    $region17: #{tpu_custom_call.1} parent=1 // pred_fallthru
      _
    // Predicated region
    $region18: #{tpu_custom_call.1} parent=1 // pred_check
      _
    $region19: #{tpu_custom_call.1} parent=1 // pred_check_branch
      %24 = sbr.rel (0) target = $region21
    $region20: #{tpu_custom_call.1} parent=1 // pred_region
      _
    $region21: #{tpu_custom_call.1} parent=1 // pred_fallthru
      _
    // Predicated region
    $region22: #{tpu_custom_call.1} parent=1 // pred_check
      _
    $region23: #{tpu_custom_call.1} parent=1 // pred_check_branch
      %26 = sbr.rel (0) target = $region25
    $region24: #{tpu_custom_call.1} parent=1 // pred_region
      _
    $region25: #{tpu_custom_call.1} parent=1 // pred_fallthru
      _
    // Predicated region
    $region26: #{tpu_custom_call.1} parent=1 // pred_check
      _
    $region27: #{tpu_custom_call.1} parent=1 // pred_check_branch
      %28 = sbr.rel (0) target = $region29
    $region28: #{tpu_custom_call.1} parent=1 // pred_region
      %s30 = ssub.s32 4096, 4096
      %31 = vsyncadd [#allocation3], %s30
      %s32 = sshll.u32 [#allocation2], 4
      %s33 = int_to_ptr.vmem [resolvable:$true] %s32
      %38 = dma.hbm_to_vmem [thread:$0]  %s6, 4096, %s33, [#allocation3], 256, 256, 16
    $region29: #{tpu_custom_call.1} parent=1 // pred_fallthru
      _
    // Predicated region
    $region30: #{tpu_custom_call.1} parent=1 // pred_check
      _
    $region31: #{tpu_custom_call.1} parent=1 // pred_check_branch
      %40 = sbr.rel (0) target = $region33
    $region32: #{tpu_custom_call.1} parent=1 // pred_region
      _
    $region33: #{tpu_custom_call.1} parent=1 // pred_fallthru
      _
    // Predicated region
    $region34: #{tpu_custom_call.1} parent=1 // pred_check
      _
    $region35: #{tpu_custom_call.1} parent=1 // pred_check_branch
      %42 = sbr.rel (0) target = $region37
    $region36: #{tpu_custom_call.1} parent=1 // pred_region
      %43 = dma.done [#allocation3], 4096
    $region37: #{tpu_custom_call.1} parent=1 // pred_fallthru
      _
    %v44 = vld [vmem:[%s0] sm:$0xf]
    %v45 = vld [vmem:[%s2] sm:$0xff]
    %v46 = vld [vmem:[%s2 + $0x8] sm:$0xff]
    %v47 = vld [vmem:[%s2 + $0x10] sm:$0xff]
    %v48 = vld [vmem:[%s2 + $0x18] sm:$0xff]
    %v49 = vld [vmem:[%s2 + $0x20] sm:$0xff]
    %v50 = vld [vmem:[%s2 + $0x28] sm:$0xff]
    %v51 = vld [vmem:[%s2 + $0x30] sm:$0xff]
    %v52 = vld [vmem:[%s2 + $0x38] sm:$0xff]
    %v53 = vld [vmem:[%s2 + $0x40] sm:$0xff]
    %v54 = vld [vmem:[%s2 + $0x48] sm:$0xff]
    %v55 = vld [vmem:[%s2 + $0x50] sm:$0xff]
    %v56 = vld [vmem:[%s2 + $0x58] sm:$0xff]
    %v57 = vld [vmem:[%s2 + $0x60] sm:$0xff]
    %v58 = vld [vmem:[%s2 + $0x68] sm:$0xff]
    %v59 = vld [vmem:[%s2 + $0x70] sm:$0xff]
    %v60 = vld [vmem:[%s2 + $0x78] sm:$0xff]
    %v61 = vld [vmem:[%s3] sm:$0xf]
    %62 = vmatprep.subr.mxu0 0.0
    %63 = vmatpush1.msra.mxu0 %v45
    %64 = vmatprep.subr.mxu0 0.0
    %65 = vmatpush1.msra.mxu0 %v46
    %66 = vmatprep.subr.mxu0 0.0
    %67 = vmatpush1.msra.mxu0 %v47
    %68 = vmatprep.subr.mxu0 0.0
    %69 = vmatpush1.msra.mxu0 %v48
    %70 = vmatprep.subr.mxu0 0.0
    %71 = vmatpush1.msra.mxu0 %v49
    %72 = vmatprep.subr.mxu0 0.0
    %73 = vmatpush1.msra.mxu0 %v50
    %74 = vmatprep.subr.mxu0 0.0
    %75 = vmatpush1.msra.mxu0 %v51
    %76 = vmatprep.subr.mxu0 0.0
    %77 = vmatpush1.msra.mxu0 %v52
    %78 = vmatprep.subr.mxu0 0.0
    %79 = vmatpush1.msra.mxu0 %v53
    %80 = vmatprep.subr.mxu0 0.0
    %81 = vmatpush1.msra.mxu0 %v54
    %82 = vmatprep.subr.mxu0 0.0
    %83 = vmatpush1.msra.mxu0 %v55
    %84 = vmatprep.subr.mxu0 0.0
    %85 = vmatpush1.msra.mxu0 %v56
    %86 = vmatprep.subr.mxu0 0.0
    %87 = vmatpush1.msra.mxu0 %v57
    %88 = vmatprep.subr.mxu0 0.0
    %89 = vmatpush1.msra.mxu0 %v58
    %90 = vmatprep.subr.mxu0 0.0
    %91 = vmatpush1.msra.mxu0 %v59
    %92 = vmatprep.subr.mxu0 0.0
    %93 = vmatpush1.msra.mxu0 %v60
    %94 = vmatprep.subr.mxu0 0.0
    %95 = vmatpush1.msra.mxu0 0.0
    %96 = vmatprep.subr.mxu0 0.0
    %97 = vmatpush1.msra.mxu0 0.0
    %98 = vmatprep.subr.mxu0 0.0
    %99 = vmatpush1.msra.mxu0 0.0
    %100 = vmatprep.subr.mxu0 0.0
    %101 = vmatpush1.msra.mxu0 0.0
    %102 = vmatprep.subr.mxu0 0.0
    %103 = vmatpush1.msra.mxu0 0.0
    %104 = vmatprep.subr.mxu0 0.0
    %105 = vmatpush1.msra.mxu0 0.0
    %106 = vmatprep.subr.mxu0 0.0
    %107 = vmatpush1.msra.mxu0 0.0
    %108 = vmatprep.subr.mxu0 0.0
    %109 = vmatpush1.msra.mxu0 0.0
    %110 = vmatprep.subr.mxu0 0.0
    %111 = vmatpush1.msra.mxu0 0.0
    %112 = vmatprep.subr.mxu0 0.0
    %113 = vmatpush1.msra.mxu0 0.0
    %114 = vmatprep.subr.mxu0 0.0
    %115 = vmatpush1.msra.mxu0 0.0
    %116 = vmatprep.subr.mxu0 0.0
    %117 = vmatpush1.msra.mxu0 0.0
    %118 = vmatprep.subr.mxu0 0.0
    %119 = vmatpush1.msra.mxu0 0.0
    %120 = vmatprep.subr.mxu0 0.0
    %121 = vmatpush1.msra.mxu0 0.0
    %122 = vmatprep.subr.mxu0 0.0
    %123 = vmatpush1.msra.mxu0 0.0
    %124 = vmatprep.subr.mxu0 0.0
    %125 = vmatpush1.msra.mxu0 0.0
    %126 = vmatprep.mubr.f32.mxu0 0.0
    %127 = vmatmul.mubr.f32.gmra.mrb[0].mxu0 %v44
    %v128 = vpop.f32.mrb[0].mxu0
    %v129 = vadd.f32 0.0, %v128
    %v130 = vpop.f32.mrb[0].mxu0
    %131 = vdwg.mxu0
    %vm132 = vcmask 31744
    %v134 = vsel %vm132, %v129, 0
    %vm136 = vcmask 1043456
    %v138 = vsel %vm136, %v61, 0
    %140 = vmatprep.subr.mxu0 0.0
    %141 = vmatpush1.msra.mxu0 %v138
    %142 = vmatprep.subr.mxu0 0.0
    %143 = vmatpush1.msra.mxu0 0.0
    %144 = vmatprep.subr.mxu0 0.0
    %145 = vmatpush1.msra.mxu0 0.0
    %146 = vmatprep.subr.mxu0 0.0
    %147 = vmatpush1.msra.mxu0 0.0
    %148 = vmatprep.subr.mxu0 0.0
    %149 = vmatpush1.msra.mxu0 0.0
    %150 = vmatprep.subr.mxu0 0.0
    %151 = vmatpush1.msra.mxu0 0.0
    %152 = vmatprep.subr.mxu0 0.0
    %153 = vmatpush1.msra.mxu0 0.0
    %154 = vmatprep.subr.mxu0 0.0
    %155 = vmatpush1.msra.mxu0 0.0
    %156 = vmatprep.subr.mxu0 0.0
    %157 = vmatpush1.msra.mxu0 0.0
    %158 = vmatprep.subr.mxu0 0.0
    %159 = vmatpush1.msra.mxu0 0.0
    %160 = vmatprep.subr.mxu0 0.0
    %161 = vmatpush1.msra.mxu0 0.0
    %162 = vmatprep.subr.mxu0 0.0
    %163 = vmatpush1.msra.mxu0 0.0
    %164 = vmatprep.subr.mxu0 0.0
    %165 = vmatpush1.msra.mxu0 0.0
    %166 = vmatprep.subr.mxu0 0.0
    %167 = vmatpush1.msra.mxu0 0.0
    %168 = vmatprep.subr.mxu0 0.0
    %169 = vmatpush1.msra.mxu0 0.0
    %170 = vmatprep.subr.mxu0 0.0
    %171 = vmatpush1.msra.mxu0 0.0
    %172 = vmatprep.subr.mxu0 0.0
    %173 = vmatpush1.msra.mxu0 0.0
    %174 = vmatprep.subr.mxu0 0.0
    %175 = vmatpush1.msra.mxu0 0.0
    %176 = vmatprep.subr.mxu0 0.0
    %177 = vmatpush1.msra.mxu0 0.0
    %178 = vmatprep.subr.mxu0 0.0
    %179 = vmatpush1.msra.mxu0 0.0
    %180 = vmatprep.subr.mxu0 0.0
    %181 = vmatpush1.msra.mxu0 0.0
    %182 = vmatprep.subr.mxu0 0.0
    %183 = vmatpush1.msra.mxu0 0.0
    %184 = vmatprep.subr.mxu0 0.0
    %185 = vmatpush1.msra.mxu0 0.0
    %186 = vmatprep.subr.mxu0 0.0
    %187 = vmatpush1.msra.mxu0 0.0
    %188 = vmatprep.subr.mxu0 0.0
    %189 = vmatpush1.msra.mxu0 0.0
    %190 = vmatprep.subr.mxu0 0.0
    %191 = vmatpush1.msra.mxu0 0.0
    %192 = vmatprep.subr.mxu0 0.0
    %193 = vmatpush1.msra.mxu0 0.0
    %194 = vmatprep.subr.mxu0 0.0
    %195 = vmatpush1.msra.mxu0 0.0
    %196 = vmatprep.subr.mxu0 0.0
    %197 = vmatpush1.msra.mxu0 0.0
    %198 = vmatprep.subr.mxu0 0.0
    %199 = vmatpush1.msra.mxu0 0.0
    %200 = vmatprep.subr.mxu0 0.0
    %201 = vmatpush1.msra.mxu0 0.0
    %202 = vmatprep.subr.mxu0 0.0
    %203 = vmatpush1.msra.mxu0 0.0
    %204 = vmatprep.mubr.f32.mxu0 0.0
    %205 = vmatmul.mubr.f32.gmra.mrb[0].mxu0 %v134
    %v206 = vpop.f32.mrb[0].mxu0
    %v207 = vadd.f32 0.0, %v206
    %v208 = vpop.f32.mrb[0].mxu0
    %209 = vdwg.mxu0
    %v210 = vsub.f32 %v44, %v207
    %v211 = vmul.f32 %v210, %v210
    %212 = vmatprep.subr.mxu0 0.0
    %213 = vmatpush1.msra.mxu0 %v45
    %214 = vmatprep.subr.mxu0 0.0
    %215 = vmatpush1.msra.mxu0 %v46
    %216 = vmatprep.subr.mxu0 0.0
    %217 = vmatpush1.msra.mxu0 %v47
    %218 = vmatprep.subr.mxu0 0.0
    %219 = vmatpush1.msra.mxu0 %v48
    %220 = vmatprep.subr.mxu0 0.0
    %221 = vmatpush1.msra.mxu0 %v49
    %222 = vmatprep.subr.mxu0 0.0
    %223 = vmatpush1.msra.mxu0 %v50
    %224 = vmatprep.subr.mxu0 0.0
    %225 = vmatpush1.msra.mxu0 %v51
    %226 = vmatprep.subr.mxu0 0.0
    %227 = vmatpush1.msra.mxu0 %v52
    %228 = vmatprep.subr.mxu0 0.0
    %229 = vmatpush1.msra.mxu0 %v53
    %230 = vmatprep.subr.mxu0 0.0
    %231 = vmatpush1.msra.mxu0 %v54
    %232 = vmatprep.subr.mxu0 0.0
    %233 = vmatpush1.msra.mxu0 %v55
    %234 = vmatprep.subr.mxu0 0.0
    %235 = vmatpush1.msra.mxu0 %v56
    %236 = vmatprep.subr.mxu0 0.0
    %237 = vmatpush1.msra.mxu0 %v57
    %238 = vmatprep.subr.mxu0 0.0
    %239 = vmatpush1.msra.mxu0 %v58
    %240 = vmatprep.subr.mxu0 0.0
    %241 = vmatpush1.msra.mxu0 %v59
    %242 = vmatprep.subr.mxu0 0.0
    %243 = vmatpush1.msra.mxu0 %v60
    %244 = vmatprep.subr.mxu0 0.0
    %245 = vmatpush1.msra.mxu0 0.0
    %246 = vmatprep.subr.mxu0 0.0
    %247 = vmatpush1.msra.mxu0 0.0
    %248 = vmatprep.subr.mxu0 0.0
    %249 = vmatpush1.msra.mxu0 0.0
    %250 = vmatprep.subr.mxu0 0.0
    %251 = vmatpush1.msra.mxu0 0.0
    %252 = vmatprep.subr.mxu0 0.0
    %253 = vmatpush1.msra.mxu0 0.0
    %254 = vmatprep.subr.mxu0 0.0
    %255 = vmatpush1.msra.mxu0 0.0
    %256 = vmatprep.subr.mxu0 0.0
    %257 = vmatpush1.msra.mxu0 0.0
    %258 = vmatprep.subr.mxu0 0.0
    %259 = vmatpush1.msra.mxu0 0.0
    %260 = vmatprep.subr.mxu0 0.0
    %261 = vmatpush1.msra.mxu0 0.0
    %262 = vmatprep.subr.mxu0 0.0
    %263 = vmatpush1.msra.mxu0 0.0
    %264 = vmatprep.subr.mxu0 0.0
    %265 = vmatpush1.msra.mxu0 0.0
    %266 = vmatprep.subr.mxu0 0.0
    %267 = vmatpush1.msra.mxu0 0.0
    %268 = vmatprep.subr.mxu0 0.0
    %269 = vmatpush1.msra.mxu0 0.0
    %270 = vmatprep.subr.mxu0 0.0
    %271 = vmatpush1.msra.mxu0 0.0
    %272 = vmatprep.subr.mxu0 0.0
    %273 = vmatpush1.msra.mxu0 0.0
    %274 = vmatprep.subr.mxu0 0.0
    %275 = vmatpush1.msra.mxu0 0.0
    %276 = vmatprep.mubr.f32.mxu0 0.0
    %277 = vmatmul.mubr.f32.gmra.mrb[0].mxu0 %v211
    %v278 = vpop.f32.mrb[0].mxu0
    %v279 = vadd.f32 1e-05, %v278
    %v280 = vpop.f32.mrb[0].mxu0
    %281 = vdwg.mxu0
    %v282 = vrsqrt.pop %v279
    %v284 = vsel %vm132, %v282, 0
    %286 = vmatprep.subr.mxu0 0.0
    %287 = vmatpush1.msra.mxu0 %v138
    %288 = vmatprep.subr.mxu0 0.0
    %289 = vmatpush1.msra.mxu0 0.0
    %290 = vmatprep.subr.mxu0 0.0
    %291 = vmatpush1.msra.mxu0 0.0
    %292 = vmatprep.subr.mxu0 0.0
    %293 = vmatpush1.msra.mxu0 0.0
    %294 = vmatprep.subr.mxu0 0.0
    %295 = vmatpush1.msra.mxu0 0.0
    %296 = vmatprep.subr.mxu0 0.0
    %297 = vmatpush1.msra.mxu0 0.0
    %298 = vmatprep.subr.mxu0 0.0
    %299 = vmatpush1.msra.mxu0 0.0
    %300 = vmatprep.subr.mxu0 0.0
    %301 = vmatpush1.msra.mxu0 0.0
    %302 = vmatprep.subr.mxu0 0.0
    %303 = vmatpush1.msra.mxu0 0.0
    %304 = vmatprep.subr.mxu0 0.0
    %305 = vmatpush1.msra.mxu0 0.0
    %306 = vmatprep.subr.mxu0 0.0
    %307 = vmatpush1.msra.mxu0 0.0
    %308 = vmatprep.subr.mxu0 0.0
    %309 = vmatpush1.msra.mxu0 0.0
    %310 = vmatprep.subr.mxu0 0.0
    %311 = vmatpush1.msra.mxu0 0.0
    %312 = vmatprep.subr.mxu0 0.0
    %313 = vmatpush1.msra.mxu0 0.0
    %314 = vmatprep.subr.mxu0 0.0
    %315 = vmatpush1.msra.mxu0 0.0
    %316 = vmatprep.subr.mxu0 0.0
    %317 = vmatpush1.msra.mxu0 0.0
    %318 = vmatprep.subr.mxu0 0.0
    %319 = vmatpush1.msra.mxu0 0.0
    %320 = vmatprep.subr.mxu0 0.0
    %321 = vmatpush1.msra.mxu0 0.0
    %322 = vmatprep.subr.mxu0 0.0
    %323 = vmatpush1.msra.mxu0 0.0
    %324 = vmatprep.subr.mxu0 0.0
    %325 = vmatpush1.msra.mxu0 0.0
    %326 = vmatprep.subr.mxu0 0.0
    %327 = vmatpush1.msra.mxu0 0.0
    %328 = vmatprep.subr.mxu0 0.0
    %329 = vmatpush1.msra.mxu0 0.0
    %330 = vmatprep.subr.mxu0 0.0
    %331 = vmatpush1.msra.mxu0 0.0
    %332 = vmatprep.subr.mxu0 0.0
    %333 = vmatpush1.msra.mxu0 0.0
    %334 = vmatprep.subr.mxu0 0.0
    %335 = vmatpush1.msra.mxu0 0.0
    %336 = vmatprep.subr.mxu0 0.0
    %337 = vmatpush1.msra.mxu0 0.0
    %338 = vmatprep.subr.mxu0 0.0
    %339 = vmatpush1.msra.mxu0 0.0
    %340 = vmatprep.subr.mxu0 0.0
    %341 = vmatpush1.msra.mxu0 0.0
    %342 = vmatprep.subr.mxu0 0.0
    %343 = vmatpush1.msra.mxu0 0.0
    %344 = vmatprep.subr.mxu0 0.0
    %345 = vmatpush1.msra.mxu0 0.0
    %346 = vmatprep.subr.mxu0 0.0
    %347 = vmatpush1.msra.mxu0 0.0
    %348 = vmatprep.subr.mxu0 0.0
    %349 = vmatpush1.msra.mxu0 0.0
    %350 = vmatprep.mubr.f32.mxu0 0.0
    %351 = vmatmul.mubr.f32.gmra.mrb[0].mxu0 %v284
    %v352 = vpop.f32.mrb[0].mxu0
    %v353 = vadd.f32 0.0, %v352
    %v354 = vpop.f32.mrb[0].mxu0
    %355 = vdwg.mxu0
    %v356 = vmul.f32 %v210, %v353
    %v357 = vld [vmem:[%s1] sm:$0xf]
    %v358 = vld [vmem:[%s4] sm:$0xff]
    %v359 = vld [vmem:[%s4 + $0x8] sm:$0xff]
    %v360 = vld [vmem:[%s4 + $0x10] sm:$0xff]
    %v361 = vld [vmem:[%s4 + $0x18] sm:$0xff]
    %v362 = vld [vmem:[%s5] sm:$0x1]
    %v364 = vlaneseq
    %v365 = vshrl.u32 %v364, 7
    %v366 = vsub.s32 0, %v365
    %v367 = vrot.slane %v362, %v366
    %vm369 = vcmask 261120
    %v371 = vsel %vm369, %v357, 0
    %373 = vmatprep.subr.mxu0 0.0
    %374 = vmatpush1.msra.mxu0 %v358
    %375 = vmatprep.subr.mxu0 0.0
    %376 = vmatpush1.msra.mxu0 %v359
    %377 = vmatprep.subr.mxu0 0.0
    %378 = vmatpush1.msra.mxu0 %v360
    %379 = vmatprep.subr.mxu0 0.0
    %380 = vmatpush1.msra.mxu0 %v361
    %381 = vmatprep.subr.mxu0 0.0
    %382 = vmatpush1.msra.mxu0 0.0
    %383 = vmatprep.subr.mxu0 0.0
    %384 = vmatpush1.msra.mxu0 0.0
    %385 = vmatprep.subr.mxu0 0.0
    %386 = vmatpush1.msra.mxu0 0.0
    %387 = vmatprep.subr.mxu0 0.0
    %388 = vmatpush1.msra.mxu0 0.0
    %389 = vmatprep.subr.mxu0 0.0
    %390 = vmatpush1.msra.mxu0 0.0
    %391 = vmatprep.subr.mxu0 0.0
    %392 = vmatpush1.msra.mxu0 0.0
    %393 = vmatprep.subr.mxu0 0.0
    %394 = vmatpush1.msra.mxu0 0.0
    %395 = vmatprep.subr.mxu0 0.0
    %396 = vmatpush1.msra.mxu0 0.0
    %397 = vmatprep.subr.mxu0 0.0
    %398 = vmatpush1.msra.mxu0 0.0
    %399 = vmatprep.subr.mxu0 0.0
    %400 = vmatpush1.msra.mxu0 0.0
    %401 = vmatprep.subr.mxu0 0.0
    %402 = vmatpush1.msra.mxu0 0.0
    %403 = vmatprep.subr.mxu0 0.0
    %404 = vmatpush1.msra.mxu0 0.0
    %405 = vmatprep.subr.mxu0 0.0
    %406 = vmatpush1.msra.mxu0 0.0
    %407 = vmatprep.subr.mxu0 0.0
    %408 = vmatpush1.msra.mxu0 0.0
    %409 = vmatprep.subr.mxu0 0.0
    %410 = vmatpush1.msra.mxu0 0.0
    %411 = vmatprep.subr.mxu0 0.0
    %412 = vmatpush1.msra.mxu0 0.0
    %413 = vmatprep.subr.mxu0 0.0
    %414 = vmatpush1.msra.mxu0 0.0
    %415 = vmatprep.subr.mxu0 0.0
    %416 = vmatpush1.msra.mxu0 0.0
    %417 = vmatprep.subr.mxu0 0.0
    %418 = vmatpush1.msra.mxu0 0.0
    %419 = vmatprep.subr.mxu0 0.0
    %420 = vmatpush1.msra.mxu0 0.0
    %421 = vmatprep.subr.mxu0 0.0
    %422 = vmatpush1.msra.mxu0 0.0
    %423 = vmatprep.subr.mxu0 0.0
    %424 = vmatpush1.msra.mxu0 0.0
    %425 = vmatprep.subr.mxu0 0.0
    %426 = vmatpush1.msra.mxu0 0.0
    %427 = vmatprep.subr.mxu0 0.0
    %428 = vmatpush1.msra.mxu0 0.0
    %429 = vmatprep.subr.mxu0 0.0
    %430 = vmatpush1.msra.mxu0 0.0
    %431 = vmatprep.subr.mxu0 0.0
    %432 = vmatpush1.msra.mxu0 0.0
    %433 = vmatprep.subr.mxu0 0.0
    %434 = vmatpush1.msra.mxu0 0.0
    %435 = vmatprep.subr.mxu0 0.0
    %436 = vmatpush1.msra.mxu0 0.0
    %437 = vmatprep.mubr.f32.mxu0 0.0
    %438 = vmatmul.mubr.f32.gmra.mrb[0].mxu0 %v371
    %v439 = vpop.f32.mrb[0].mxu0
    %v440 = vadd.f32 %v367, %v439
    %v441 = vpop.f32.mrb[0].mxu0
    %442 = vdwg.mxu0
    %v443 = vmax.f32 %v440, 0.0
    %v444 = vld [vmem:[#allocation2] sm:$0xff]
    %v445 = vld [vmem:[#allocation2 + $0x8] sm:$0xff]
    %v446 = vld [vmem:[#allocation2 + $0x10] sm:$0xff]
    %v447 = vld [vmem:[#allocation2 + $0x18] sm:$0xff]
    %v448 = vld [vmem:[#allocation2 + $0x20] sm:$0xff]
    %v449 = vld [vmem:[#allocation2 + $0x28] sm:$0xff]
    %v450 = vld [vmem:[#allocation2 + $0x30] sm:$0xff]
    %v451 = vld [vmem:[#allocation2 + $0x38] sm:$0xff]
    %v452 = vld [vmem:[#allocation2 + $0x40] sm:$0xff]
    %v453 = vld [vmem:[#allocation2 + $0x48] sm:$0xff]
    %v454 = vld [vmem:[#allocation2 + $0x50] sm:$0xff]
    %v455 = vld [vmem:[#allocation2 + $0x58] sm:$0xff]
    %v456 = vld [vmem:[#allocation2 + $0x60] sm:$0xff]
    %v457 = vld [vmem:[#allocation2 + $0x68] sm:$0xff]
    %v458 = vld [vmem:[#allocation2 + $0x70] sm:$0xff]
    %v459 = vld [vmem:[#allocation2 + $0x78] sm:$0xff]
    %v460 = vld [vmem:[#allocation2 + $0x80] sm:$0xff]
    %v461 = vld [vmem:[#allocation2 + $0x88] sm:$0xff]
    %v462 = vld [vmem:[#allocation2 + $0x90] sm:$0xff]
    %v463 = vld [vmem:[#allocation2 + $0x98] sm:$0xff]
    %v464 = vld [vmem:[#allocation2 + $0xa0] sm:$0xff]
    %v465 = vld [vmem:[#allocation2 + $0xa8] sm:$0xff]
    %v466 = vld [vmem:[#allocation2 + $0xb0] sm:$0xff]
    %v467 = vld [vmem:[#allocation2 + $0xb8] sm:$0xff]
    %v468 = vld [vmem:[#allocation2 + $0xc0] sm:$0xff]
    %v469 = vld [vmem:[#allocation2 + $0xc8] sm:$0xff]
    %v470 = vld [vmem:[#allocation2 + $0xd0] sm:$0xff]
    %v471 = vld [vmem:[#allocation2 + $0xd8] sm:$0xff]
    %v472 = vld [vmem:[#allocation2 + $0xe0] sm:$0xff]
    %v473 = vld [vmem:[#allocation2 + $0xe8] sm:$0xff]
    %v474 = vld [vmem:[#allocation2 + $0xf0] sm:$0xff]
    %v475 = vld [vmem:[#allocation2 + $0xf8] sm:$0xff]
    %v476 = vld [vmem:[%s7] sm:$0x3]
    %v478 = vlaneseq
    %v479 = vshrl.u32 %v478, 7
    %v480 = vsub.s32 0, %v479
    %v481 = vrot.slane %v476, %v480
    %v482 = vlaneseq
    %v483 = vshrl.u32 %v482, 7
    %v484 = vsub.s32 1, %v483
    %v485 = vrot.slane %v476, %v484
    %488 = vmatprep.subr.mxu0 %v445
    %489 = vmatpush1.msra.mxu0 %v444
    %490 = vmatprep.subr.mxu0 %v447
    %491 = vmatpush1.msra.mxu0 %v446
    %492 = vmatprep.subr.mxu0 %v449
    %493 = vmatpush1.msra.mxu0 %v448
    %494 = vmatprep.subr.mxu0 %v451
    %495 = vmatpush1.msra.mxu0 %v450
    %496 = vmatprep.subr.mxu0 %v453
    %497 = vmatpush1.msra.mxu0 %v452
    %498 = vmatprep.subr.mxu0 %v455
    %499 = vmatpush1.msra.mxu0 %v454
    %500 = vmatprep.subr.mxu0 %v457
    %501 = vmatpush1.msra.mxu0 %v456
    %502 = vmatprep.subr.mxu0 %v459
    %503 = vmatpush1.msra.mxu0 %v458
    %504 = vmatprep.subr.mxu0 %v461
    %505 = vmatpush1.msra.mxu0 %v460
    %506 = vmatprep.subr.mxu0 %v463
    %507 = vmatpush1.msra.mxu0 %v462
    %508 = vmatprep.subr.mxu0 %v465
    %509 = vmatpush1.msra.mxu0 %v464
    %510 = vmatprep.subr.mxu0 %v467
    %511 = vmatpush1.msra.mxu0 %v466
    %512 = vmatprep.subr.mxu0 %v469
    %513 = vmatpush1.msra.mxu0 %v468
    %514 = vmatprep.subr.mxu0 %v471
    %515 = vmatpush1.msra.mxu0 %v470
    %516 = vmatprep.subr.mxu0 %v473
    %517 = vmatpush1.msra.mxu0 %v472
    %518 = vmatprep.subr.mxu0 %v475
    %519 = vmatpush1.msra.mxu0 %v474
    %520 = vmatprep.subr.mxu0 0.0
    %521 = vmatpush1.msra.mxu0 0.0
    %522 = vmatprep.subr.mxu0 0.0
    %523 = vmatpush1.msra.mxu0 0.0
    %524 = vmatprep.subr.mxu0 0.0
    %525 = vmatpush1.msra.mxu0 0.0
    %526 = vmatprep.subr.mxu0 0.0
    %527 = vmatpush1.msra.mxu0 0.0
    %528 = vmatprep.subr.mxu0 0.0
    %529 = vmatpush1.msra.mxu0 0.0
    %530 = vmatprep.subr.mxu0 0.0
    %531 = vmatpush1.msra.mxu0 0.0
    %532 = vmatprep.subr.mxu0 0.0
    %533 = vmatpush1.msra.mxu0 0.0
    %534 = vmatprep.subr.mxu0 0.0
    %535 = vmatpush1.msra.mxu0 0.0
    %536 = vmatprep.subr.mxu0 0.0
    %537 = vmatpush1.msra.mxu0 0.0
    %538 = vmatprep.subr.mxu0 0.0
    %539 = vmatpush1.msra.mxu0 0.0
    %540 = vmatprep.subr.mxu0 0.0
    %541 = vmatpush1.msra.mxu0 0.0
    %542 = vmatprep.subr.mxu0 0.0
    %543 = vmatpush1.msra.mxu0 0.0
    %544 = vmatprep.subr.mxu0 0.0
    %545 = vmatpush1.msra.mxu0 0.0
    %546 = vmatprep.subr.mxu0 0.0
    %547 = vmatpush1.msra.mxu0 0.0
    %548 = vmatprep.subr.mxu0 0.0
    %549 = vmatpush1.msra.mxu0 0.0
    %550 = vmatprep.subr.mxu0 0.0
    %551 = vmatpush1.msra.mxu0 0.0
    %552 = vmatprep.mubr.f32.mxu0 0.0
    %553 = vmatmul.mubr.f32.gmra.mrb[0].mxu0 %v443
    %v554 = vpop.f32.mrb[0].mxu0
    %v555 = vadd.f32 %v481, %v554
    %v556 = vpop.f32.mrb[0].mxu0
    %v557 = vadd.f32 %v485, %v556
    %558 = vdwg.mxu0
    %v559 = vmul.f32 %v555, %v356
    %v560 = vadd.f32 %v559, %v557
    %561 = vst [vmem:[#allocation5] sm:$0xf] %v560
    // Predicated region
    $region38: #{tpu_custom_call.1} parent=1 // pred_check
      _
    $region39: #{tpu_custom_call.1} parent=1 // pred_check_branch
      %563 = sbr.rel (0) target = $region41
    $region40: #{tpu_custom_call.1} parent=1 // pred_region
      %s565 = ssub.s32 64, 64
      %566 = vsyncadd [#allocation4], %s565
      %s568 = sshll.u32 [#allocation5], 4
      %s569 = int_to_ptr.vmem [resolvable:$true] %s568
      %571 = dma.vmem_to_hbm [thread:$0]  %s569, 64, %s8, [#allocation4]
    $region41: #{tpu_custom_call.1} parent=1 // pred_fallthru
      _
    // Predicated region
    $region42: #{tpu_custom_call.1} parent=1 // pred_check
      _
    $region43: #{tpu_custom_call.1} parent=1 // pred_check_branch
      %573 = sbr.rel (0) target = $region45
    $region44: #{tpu_custom_call.1} parent=1 // pred_region
      %574 = dma.done [#allocation4], 64
    $region45: #{tpu_custom_call.1} parent=1 // pred_fallthru
      _
    %575 = vsyncpa [#allocation3], 1
    %576 = vsyncpa [#allocation4], 1

</llo_original>
